<compile_context>
chip_gen: v5e
topology: v5e:2x2
jax: 0.10.0
libtpu: 0.0.40
codegen_flags: <defaults>
</compile_context>

<pallas_src>
import jax
import jax.numpy as jnp
from jax.experimental import pallas as pl
from jax.experimental.pallas import tpu as pltpu

KSIZE = 15
PAD = 7
NEG_SLOPE = 0.2
N_LAYERS = 4
N_BRANCH = 2


def _shifted_stack(h, masks, lw):
    """Stack of lane-shifted copies of h: (C, Lw) -> (KSIZE*C, Lw).

    Row k*C + c holds h[c, l + (k - PAD)] with zero fill outside each length-L
    batch segment (masks are periodic in lane % L).  One XLU roll + one select
    per non-zero shift; the result feeds a single MXU matmul with K = 15*C.
    """
    pieces = []
    for k in range(KSIZE):
        d = k - PAD
        if d == 0:
            pieces.append(h)
        else:
            rolled = pltpu.roll(h, shift=(-d) % lw, axis=1)  # rolled[:,l]=h[:,(l+d)%Lw]
            pieces.append(jnp.where(masks[d], rolled, 0.0))
    return jnp.concatenate(pieces, axis=0)


def attention_block_sparse_kernel(x_ref, w0_ref, wr_ref, b0_ref, br_ref,
                                  emb1_ref, emb2_ref, beta1_ref, beta2_ref):
    """One grid step = G batch elements flattened along lanes (C, G*L)."""
    G, C, L = x_ref.shape
    lw = G * L

    # Widen along lanes: each x_ref[g] is a clean (C, L) tile, L a multiple of
    # 128 keeps every load/store lane-dense and unmasked.
    if G == 1:
        x = x_ref[0].astype(jnp.float32)
    else:
        x = jnp.concatenate([x_ref[g].astype(jnp.float32) for g in range(G)],
                            axis=1)                                  # (C, G*L)

    # Periodic boundary masks, hoisted: depend only on shift d (not layer/branch).
    lane_mod = jax.lax.broadcasted_iota(jnp.int32, (C, lw), 1) % L
    masks = {}
    for d in range(-PAD, PAD + 1):
        if d == 0:
            continue
        masks[d] = (lane_mod < (L - d)) if d > 0 else (lane_mod >= (-d))

    # ---- layer 0 (conv1): shared input stack, both branches fused along O ----
    xs0 = _shifted_stack(x, masks, lw)                               # (15C, Lw)
    h0 = jnp.dot(w0_ref[...].astype(jnp.float32), xs0,
                 preferred_element_type=jnp.float32)                 # (2C, Lw)
    h0 = h0 + b0_ref[...].astype(jnp.float32)

    feats = []
    for br in range(N_BRANCH):
        h = h0[br * C:(br + 1) * C]
        h = jnp.maximum(h, NEG_SLOPE * h)            # LeakyReLU after conv1
        for layer in range(1, N_LAYERS):             # conv2 .. conv4
            idx = br * (N_LAYERS - 1) + (layer - 1)
            xs = _shifted_stack(h, masks, lw)                        # (15C, Lw)
            h = jnp.dot(wr_ref[idx].astype(jnp.float32), xs,
                        preferred_element_type=jnp.float32)          # (C, Lw)
            h = h + br_ref[idx].astype(jnp.float32)
            if layer < N_LAYERS - 1:
                h = jnp.maximum(h, NEG_SLOPE * h)    # LeakyReLU after conv2/3
        feats.append(h)
    f1, f2 = feats

    # 2-way softmax == sigmoid of the difference: one exp, one recip, no max.
    diff = f1 - f2
    b1 = 1.0 / (1.0 + jnp.exp(-diff))
    b2 = 1.0 - b1

    for g in range(G):
        sl = slice(g * L, (g + 1) * L)               # lane-aligned static slice
        xg = x[:, sl]
        emb1_ref[g] = (xg * b1[:, sl]).astype(emb1_ref.dtype)
        emb2_ref[g] = (xg * b2[:, sl]).astype(emb2_ref.dtype)
        beta1_ref[g] = b1[:, sl].astype(beta1_ref.dtype)
        beta2_ref[g] = b2[:, sl].astype(beta2_ref.dtype)


def prepare_attention_weights(w_stack, b_stack):
    """One-time (load-time) re-layout of PyTorch Conv1d parameters.

    w_stack: (2, 4, O, C, 15) = (branch, layer, out_ch, in_ch, k), O == C.
    Returns:
      w0     : (2C, 15C)  conv1 weights of both branches fused along O,
               column index = k*C + c (tap-minor, lane-dense).
      w_rest : (6, C, 15C) conv2..conv4 per branch (idx = branch*3 + layer-1).
      b0     : (2C, 1), b_rest : (6, C, 1).
    Kept OUT of the per-call jit path so the transpose/reshape HBM round trip
    happens once, not per forward call.
    """
    nb, nl, o_ch, c_ch, k = w_stack.shape
    assert (nb, nl, k) == (N_BRANCH, N_LAYERS, KSIZE) and o_ch == c_ch
    C = c_ch
    w_t = jnp.transpose(w_stack, (0, 1, 2, 4, 3))            # (2,4,O,K,C)
    w_flat = w_t.reshape(N_BRANCH, N_LAYERS, C, KSIZE * C)   # (2,4,O,15C)
    w0 = jnp.concatenate([w_flat[0, 0], w_flat[1, 0]], axis=0)            # (2C,15C)
    w_rest = w_flat[:, 1:].reshape(N_BRANCH * (N_LAYERS - 1), C, KSIZE * C)
    b0 = jnp.concatenate([b_stack[0, 0], b_stack[1, 0]], axis=0).reshape(2 * C, 1)
    b_rest = b_stack[:, 1:].reshape(N_BRANCH * (N_LAYERS - 1), C, 1)
    return w0, w_rest, b0, b_rest


def _pick_batch_group(B, C, L, itemsize, budget_bytes=4 << 20):
    """Largest divisor of B whose (C, G*L) slab stays within a modest VMEM budget."""
    per = max(1, C * L * itemsize)
    g = max(1, min(B, budget_bytes // per))
    while B % g:
        g -= 1
    return g


@jax.jit
def attention_block_sparse(x, w0, w_rest, b0, b_rest):
    """x: (B, C, L) channels-first.  Weights/biases pre-laid-out by
    prepare_attention_weights.  Returns (emb1, emb2, beta1, beta2), each (B, C, L)."""
    B, C, L = x.shape
    G = _pick_batch_group(B, C, L, jnp.dtype(x.dtype).itemsize)
    out_sd = jax.ShapeDtypeStruct((B, C, L), x.dtype)
    io_spec = pl.BlockSpec((G, C, L), lambda i: (i, 0, 0))

    emb1, emb2, beta1, beta2 = pl.pallas_call(
        attention_block_sparse_kernel,
        out_shape=(out_sd, out_sd, out_sd, out_sd),
        grid_spec=pltpu.PrefetchScalarGridSpec(
            num_scalar_prefetch=0,
            grid=(B // G,),
            in_specs=[
                io_spec,                                           # x (G batches)
                pl.BlockSpec(w0.shape, lambda i: (0, 0)),          # fused conv1 W
                pl.BlockSpec(w_rest.shape, lambda i: (0, 0, 0)),   # conv2..4 W
                pl.BlockSpec(b0.shape, lambda i: (0, 0)),          # fused conv1 b
                pl.BlockSpec(b_rest.shape, lambda i: (0, 0, 0)),   # conv2..4 b
            ],
            out_specs=[io_spec, io_spec, io_spec, io_spec],
        ),
        compiler_params=pltpu.CompilerParams(
            dimension_semantics=("parallel",)),
    )(x, w0, w_rest, b0, b_rest)
    return emb1, emb2, beta1, beta2


# ------------------------- pure-JAX reference -------------------------

def _conv1d_same_ref(x, w, b):
    y = jax.lax.conv_general_dilated(
        x, w, window_strides=(1,), padding=[(PAD, PAD)],
        dimension_numbers=("NCH", "OIH", "NCH"))
    return y + b[None, :, None]


def _branch_ref(x, w_br, b_br):
    h = x
    for i in range(N_LAYERS):
        h = _conv1d_same_ref(h, w_br[i], b_br[i])
        if i < N_LAYERS - 1:
            h = jnp.where(h >= 0, h, NEG_SLOPE * h)
    return h


def _reference(x, w_stack, b_stack):
    f1 = _branch_ref(x, w_stack[0], b_stack[0])
    f2 = _branch_ref(x, w_stack[1], b_stack[1])
    m = jnp.maximum(f1, f2)
    e1 = jnp.exp(f1 - m)
    e2 = jnp.exp(f2 - m)
    s = e1 + e2
    b1 = e1 / s
    b2 = e2 / s
    return x * b1, x * b2, b1, b2


if __name__ == "__main__":
    key = jax.random.PRNGKey(0)
    B, out_ch, L = 2, 8, 128   # channels -> sublanes, L -> lanes (lane-dense)

    k_x, k_w, k_b = jax.random.split(key, 3)
    x = jax.random.normal(k_x, (B, out_ch, L), dtype=jnp.float32)
    # PyTorch Conv1d weight layout (out_ch, in_ch, ksize), stacked (branch, layer)
    w_stack = jax.random.normal(
        k_w, (N_BRANCH, N_LAYERS, out_ch, out_ch, KSIZE), dtype=jnp.float32) * 0.08
    b_stack = jax.random.normal(
        k_b, (N_BRANCH, N_LAYERS, out_ch), dtype=jnp.float32) * 0.1

    # Load-time weight re-layout (done once, outside the per-call path).
    params = prepare_attention_weights(w_stack, b_stack)

    outs = attention_block_sparse(x, *params)
    jax.block_until_ready(outs)

    refs = _reference(x, w_stack, b_stack)
    names = ("emb1", "emb2", "beta1", "beta2")
    for name, a, r in zip(names, outs, refs):
        assert a.shape == (B, out_ch, L), name
        err = float(jnp.max(jnp.abs(a - r)))
        assert jnp.allclose(a, r, atol=1e-4, rtol=1e-4), (name, err)

    print("KERNEL_OK")
</pallas_src>

<mosaic_0001>
module attributes {stable_mosaic.version = 11 : i64} {
  func.func @attention_block_sparse_kernel(%arg0: i32, %arg1: memref<2x8x128xf32, #tpu.memory_space<vmem>>, %arg2: memref<16x120xf32, #tpu.memory_space<vmem>>, %arg3: memref<6x8x120xf32, #tpu.memory_space<vmem>>, %arg4: memref<16x1xf32, #tpu.memory_space<vmem>>, %arg5: memref<6x8x1xf32, #tpu.memory_space<vmem>>, %arg6: memref<2x8x128xf32, #tpu.memory_space<vmem>>, %arg7: memref<2x8x128xf32, #tpu.memory_space<vmem>>, %arg8: memref<2x8x128xf32, #tpu.memory_space<vmem>>, %arg9: memref<2x8x128xf32, #tpu.memory_space<vmem>>) attributes {dimension_semantics = [#tpu.dimension_semantics<parallel>], iteration_bounds = array<i64: 1>, scalar_prefetch = 0 : i64, scratch_operands = 0 : i64, tpu.core_type = #tpu.core_type<tc>, window_params = [{transform_indices = @transform_0, window_bounds = array<i64: 2, 8, 128>}, {pipeline_mode = #tpu.pipeline_mode<synchronous>, transform_indices = @transform_1, window_bounds = array<i64: 16, 120>}, {pipeline_mode = #tpu.pipeline_mode<synchronous>, transform_indices = @transform_2, window_bounds = array<i64: 6, 8, 120>}, {pipeline_mode = #tpu.pipeline_mode<synchronous>, transform_indices = @transform_3, window_bounds = array<i64: 16, 1>}, {pipeline_mode = #tpu.pipeline_mode<synchronous>, transform_indices = @transform_4, window_bounds = array<i64: 6, 8, 1>}, {transform_indices = @transform_5, window_bounds = array<i64: 2, 8, 128>}, {transform_indices = @transform_6, window_bounds = array<i64: 2, 8, 128>}, {transform_indices = @transform_7, window_bounds = array<i64: 2, 8, 128>}, {transform_indices = @transform_8, window_bounds = array<i64: 2, 8, 128>}]} {
    %c0 = arith.constant 0 : index
    %c0_0 = arith.constant 0 : index
    %c0_1 = arith.constant 0 : index
    %0 = vector.load %arg1[%c0, %c0_0, %c0_1] : memref<2x8x128xf32, #tpu.memory_space<vmem>>, vector<1x8x128xf32>
    %1 = vector.shape_cast %0 : vector<1x8x128xf32> to vector<8x128xf32>
    %c1 = arith.constant 1 : index
    %c0_2 = arith.constant 0 : index
    %c0_3 = arith.constant 0 : index
    %2 = vector.load %arg1[%c1, %c0_2, %c0_3] : memref<2x8x128xf32, #tpu.memory_space<vmem>>, vector<1x8x128xf32>
    %3 = vector.shape_cast %2 : vector<1x8x128xf32> to vector<8x128xf32>
    %4 = tpu.concatenate %1, %3 in 1 : vector<8x128xf32>, vector<8x128xf32> -> vector<8x256xf32>
    %5 = tpu.iota {dimensions = array<i32: 1>} : vector<8x256xi32>
    %c128_i32 = arith.constant 128 : i32
    %c0_i32 = arith.constant 0 : i32
    %6 = arith.cmpi eq, %c128_i32, %c0_i32 : i32
    %c1_i32 = arith.constant 1 : i32
    %7 = arith.select %6, %c1_i32, %c128_i32 : i32
    %8 = vector.broadcast %7 : i32 to vector<8x256xi32>
    %9 = arith.remsi %5, %8 : vector<8x256xi32>
    %c0_i32_4 = arith.constant 0 : i32
    %10 = vector.broadcast %c0_i32_4 : i32 to vector<8x256xi32>
    %11 = arith.cmpi ne, %9, %10 : vector<8x256xi32>
    %c0_i32_5 = arith.constant 0 : i32
    %12 = vector.broadcast %c0_i32_5 : i32 to vector<8x256xi32>
    %13 = arith.cmpi slt, %9, %12 : vector<8x256xi32>
    %c0_i32_6 = arith.constant 0 : i32
    %14 = arith.cmpi slt, %7, %c0_i32_6 : i32
    %15 = vector.broadcast %14 : i1 to vector<8x256xi1>
    %16 = vector.broadcast %15 : vector<8x256xi1> to vector<8x256xi1>
    %17 = arith.xori %13, %16 : vector<8x256xi1>
    %18 = arith.andi %17, %11 : vector<8x256xi1>
    %19 = vector.broadcast %7 : i32 to vector<8x256xi32>
    %20 = arith.addi %9, %19 : vector<8x256xi32>
    %21 = arith.select %18, %20, %9 : vector<8x256xi1>, vector<8x256xi32>
    %c7_i32 = arith.constant 7 : i32
    %22 = vector.broadcast %c7_i32 : i32 to vector<8x256xi32>
    %23 = arith.cmpi sge, %21, %22 : vector<8x256xi32>
    %c6_i32 = arith.constant 6 : i32
    %24 = vector.broadcast %c6_i32 : i32 to vector<8x256xi32>
    %25 = arith.cmpi sge, %21, %24 : vector<8x256xi32>
    %c5_i32 = arith.constant 5 : i32
    %26 = vector.broadcast %c5_i32 : i32 to vector<8x256xi32>
    %27 = arith.cmpi sge, %21, %26 : vector<8x256xi32>
    %c4_i32 = arith.constant 4 : i32
    %28 = vector.broadcast %c4_i32 : i32 to vector<8x256xi32>
    %29 = arith.cmpi sge, %21, %28 : vector<8x256xi32>
    %c3_i32 = arith.constant 3 : i32
    %30 = vector.broadcast %c3_i32 : i32 to vector<8x256xi32>
    %31 = arith.cmpi sge, %21, %30 : vector<8x256xi32>
    %c2_i32 = arith.constant 2 : i32
    %32 = vector.broadcast %c2_i32 : i32 to vector<8x256xi32>
    %33 = arith.cmpi sge, %21, %32 : vector<8x256xi32>
    %c1_i32_7 = arith.constant 1 : i32
    %34 = vector.broadcast %c1_i32_7 : i32 to vector<8x256xi32>
    %35 = arith.cmpi sge, %21, %34 : vector<8x256xi32>
    %c127_i32 = arith.constant 127 : i32
    %36 = vector.broadcast %c127_i32 : i32 to vector<8x256xi32>
    %37 = arith.cmpi slt, %21, %36 : vector<8x256xi32>
    %c126_i32 = arith.constant 126 : i32
    %38 = vector.broadcast %c126_i32 : i32 to vector<8x256xi32>
    %39 = arith.cmpi slt, %21, %38 : vector<8x256xi32>
    %c125_i32 = arith.constant 125 : i32
    %40 = vector.broadcast %c125_i32 : i32 to vector<8x256xi32>
    %41 = arith.cmpi slt, %21, %40 : vector<8x256xi32>
    %c124_i32 = arith.constant 124 : i32
    %42 = vector.broadcast %c124_i32 : i32 to vector<8x256xi32>
    %43 = arith.cmpi slt, %21, %42 : vector<8x256xi32>
    %c123_i32 = arith.constant 123 : i32
    %44 = vector.broadcast %c123_i32 : i32 to vector<8x256xi32>
    %45 = arith.cmpi slt, %21, %44 : vector<8x256xi32>
    %c122_i32 = arith.constant 122 : i32
    %46 = vector.broadcast %c122_i32 : i32 to vector<8x256xi32>
    %47 = arith.cmpi slt, %21, %46 : vector<8x256xi32>
    %c121_i32 = arith.constant 121 : i32
    %48 = vector.broadcast %c121_i32 : i32 to vector<8x256xi32>
    %49 = arith.cmpi slt, %21, %48 : vector<8x256xi32>
    %c7_i32_8 = arith.constant 7 : i32
    %50 = tpu.dynamic_rotate %4 by %c7_i32_8 dim 1 : vector<8x256xf32>, i32 -> vector<8x256xf32>
    %cst = arith.constant 0.000000e+00 : f32
    %51 = vector.broadcast %cst : f32 to vector<8x256xf32>
    %52 = arith.select %23, %50, %51 : vector<8x256xi1>, vector<8x256xf32>
    %c6_i32_9 = arith.constant 6 : i32
    %53 = tpu.dynamic_rotate %4 by %c6_i32_9 dim 1 : vector<8x256xf32>, i32 -> vector<8x256xf32>
    %cst_10 = arith.constant 0.000000e+00 : f32
    %54 = vector.broadcast %cst_10 : f32 to vector<8x256xf32>
    %55 = arith.select %25, %53, %54 : vector<8x256xi1>, vector<8x256xf32>
    %c5_i32_11 = arith.constant 5 : i32
    %56 = tpu.dynamic_rotate %4 by %c5_i32_11 dim 1 : vector<8x256xf32>, i32 -> vector<8x256xf32>
    %cst_12 = arith.constant 0.000000e+00 : f32
    %57 = vector.broadcast %cst_12 : f32 to vector<8x256xf32>
    %58 = arith.select %27, %56, %57 : vector<8x256xi1>, vector<8x256xf32>
    %c4_i32_13 = arith.constant 4 : i32
    %59 = tpu.dynamic_rotate %4 by %c4_i32_13 dim 1 : vector<8x256xf32>, i32 -> vector<8x256xf32>
    %cst_14 = arith.constant 0.000000e+00 : f32
    %60 = vector.broadcast %cst_14 : f32 to vector<8x256xf32>
    %61 = arith.select %29, %59, %60 : vector<8x256xi1>, vector<8x256xf32>
    %c3_i32_15 = arith.constant 3 : i32
    %62 = tpu.dynamic_rotate %4 by %c3_i32_15 dim 1 : vector<8x256xf32>, i32 -> vector<8x256xf32>
    %cst_16 = arith.constant 0.000000e+00 : f32
    %63 = vector.broadcast %cst_16 : f32 to vector<8x256xf32>
    %64 = arith.select %31, %62, %63 : vector<8x256xi1>, vector<8x256xf32>
    %c2_i32_17 = arith.constant 2 : i32
    %65 = tpu.dynamic_rotate %4 by %c2_i32_17 dim 1 : vector<8x256xf32>, i32 -> vector<8x256xf32>
    %cst_18 = arith.constant 0.000000e+00 : f32
    %66 = vector.broadcast %cst_18 : f32 to vector<8x256xf32>
    %67 = arith.select %33, %65, %66 : vector<8x256xi1>, vector<8x256xf32>
    %c1_i32_19 = arith.constant 1 : i32
    %68 = tpu.dynamic_rotate %4 by %c1_i32_19 dim 1 : vector<8x256xf32>, i32 -> vector<8x256xf32>
    %cst_20 = arith.constant 0.000000e+00 : f32
    %69 = vector.broadcast %cst_20 : f32 to vector<8x256xf32>
    %70 = arith.select %35, %68, %69 : vector<8x256xi1>, vector<8x256xf32>
    %c255_i32 = arith.constant 255 : i32
    %71 = tpu.dynamic_rotate %4 by %c255_i32 dim 1 : vector<8x256xf32>, i32 -> vector<8x256xf32>
    %cst_21 = arith.constant 0.000000e+00 : f32
    %72 = vector.broadcast %cst_21 : f32 to vector<8x256xf32>
    %73 = arith.select %37, %71, %72 : vector<8x256xi1>, vector<8x256xf32>
    %c254_i32 = arith.constant 254 : i32
    %74 = tpu.dynamic_rotate %4 by %c254_i32 dim 1 : vector<8x256xf32>, i32 -> vector<8x256xf32>
    %cst_22 = arith.constant 0.000000e+00 : f32
    %75 = vector.broadcast %cst_22 : f32 to vector<8x256xf32>
    %76 = arith.select %39, %74, %75 : vector<8x256xi1>, vector<8x256xf32>
    %c253_i32 = arith.constant 253 : i32
    %77 = tpu.dynamic_rotate %4 by %c253_i32 dim 1 : vector<8x256xf32>, i32 -> vector<8x256xf32>
    %cst_23 = arith.constant 0.000000e+00 : f32
    %78 = vector.broadcast %cst_23 : f32 to vector<8x256xf32>
    %79 = arith.select %41, %77, %78 : vector<8x256xi1>, vector<8x256xf32>
    %c252_i32 = arith.constant 252 : i32
    %80 = tpu.dynamic_rotate %4 by %c252_i32 dim 1 : vector<8x256xf32>, i32 -> vector<8x256xf32>
    %cst_24 = arith.constant 0.000000e+00 : f32
    %81 = vector.broadcast %cst_24 : f32 to vector<8x256xf32>
    %82 = arith.select %43, %80, %81 : vector<8x256xi1>, vector<8x256xf32>
    %c251_i32 = arith.constant 251 : i32
    %83 = tpu.dynamic_rotate %4 by %c251_i32 dim 1 : vector<8x256xf32>, i32 -> vector<8x256xf32>
    %cst_25 = arith.constant 0.000000e+00 : f32
    %84 = vector.broadcast %cst_25 : f32 to vector<8x256xf32>
    %85 = arith.select %45, %83, %84 : vector<8x256xi1>, vector<8x256xf32>
    %c250_i32 = arith.constant 250 : i32
    %86 = tpu.dynamic_rotate %4 by %c250_i32 dim 1 : vector<8x256xf32>, i32 -> vector<8x256xf32>
    %cst_26 = arith.constant 0.000000e+00 : f32
    %87 = vector.broadcast %cst_26 : f32 to vector<8x256xf32>
    %88 = arith.select %47, %86, %87 : vector<8x256xi1>, vector<8x256xf32>
    %c249_i32 = arith.constant 249 : i32
    %89 = tpu.dynamic_rotate %4 by %c249_i32 dim 1 : vector<8x256xf32>, i32 -> vector<8x256xf32>
    %cst_27 = arith.constant 0.000000e+00 : f32
    %90 = vector.broadcast %cst_27 : f32 to vector<8x256xf32>
    %91 = arith.select %49, %89, %90 : vector<8x256xi1>, vector<8x256xf32>
    %92 = tpu.concatenate %52, %55, %58, %61, %64, %67, %70, %4, %73, %76, %79, %82, %85, %88, %91 in 0 : vector<8x256xf32>, vector<8x256xf32>, vector<8x256xf32>, vector<8x256xf32>, vector<8x256xf32>, vector<8x256xf32>, vector<8x256xf32>, vector<8x256xf32>, vector<8x256xf32>, vector<8x256xf32>, vector<8x256xf32>, vector<8x256xf32>, vector<8x256xf32>, vector<8x256xf32>, vector<8x256xf32> -> vector<120x256xf32>
    %c0_28 = arith.constant 0 : index
    %c0_29 = arith.constant 0 : index
    %93 = vector.load %arg2[%c0_28, %c0_29] : memref<16x120xf32, #tpu.memory_space<vmem>>, vector<16x120xf32>
    %cst_30 = arith.constant dense<0.000000e+00> : vector<16x256xf32>
    %94 = tpu.matmul %93, %92, %cst_30 {dimension_numbers = #tpu.dot_dimension_numbers<[1], [0], [0], [1], [0, 0, 1, 1], [], []>} : vector<16x120xf32>, vector<120x256xf32>, vector<16x256xf32> -> vector<16x256xf32>
    %c0_31 = arith.constant 0 : index
    %c0_32 = arith.constant 0 : index
    %95 = vector.load %arg4[%c0_31, %c0_32] : memref<16x1xf32, #tpu.memory_space<vmem>>, vector<16x1xf32>
    %96 = vector.broadcast %95 : vector<16x1xf32> to vector<16x256xf32>
    %97 = arith.addf %94, %96 : vector<16x256xf32>
    %98 = vector.extract_strided_slice %97 {offsets = [0, 0], sizes = [8, 256], strides = [1, 1]} : vector<16x256xf32> to vector<8x256xf32>
    %cst_33 = arith.constant 2.000000e-01 : f32
    %99 = vector.broadcast %cst_33 : f32 to vector<8x256xf32>
    %100 = arith.mulf %99, %98 : vector<8x256xf32>
    %101 = arith.maximumf %98, %100 : vector<8x256xf32>
    %c7_i32_34 = arith.constant 7 : i32
    %102 = tpu.dynamic_rotate %101 by %c7_i32_34 dim 1 : vector<8x256xf32>, i32 -> vector<8x256xf32>
    %cst_35 = arith.constant 0.000000e+00 : f32
    %103 = vector.broadcast %cst_35 : f32 to vector<8x256xf32>
    %104 = arith.select %23, %102, %103 : vector<8x256xi1>, vector<8x256xf32>
    %c6_i32_36 = arith.constant 6 : i32
    %105 = tpu.dynamic_rotate %101 by %c6_i32_36 dim 1 : vector<8x256xf32>, i32 -> vector<8x256xf32>
    %cst_37 = arith.constant 0.000000e+00 : f32
    %106 = vector.broadcast %cst_37 : f32 to vector<8x256xf32>
    %107 = arith.select %25, %105, %106 : vector<8x256xi1>, vector<8x256xf32>
    %c5_i32_38 = arith.constant 5 : i32
    %108 = tpu.dynamic_rotate %101 by %c5_i32_38 dim 1 : vector<8x256xf32>, i32 -> vector<8x256xf32>
    %cst_39 = arith.constant 0.000000e+00 : f32
    %109 = vector.broadcast %cst_39 : f32 to vector<8x256xf32>
    %110 = arith.select %27, %108, %109 : vector<8x256xi1>, vector<8x256xf32>
    %c4_i32_40 = arith.constant 4 : i32
    %111 = tpu.dynamic_rotate %101 by %c4_i32_40 dim 1 : vector<8x256xf32>, i32 -> vector<8x256xf32>
    %cst_41 = arith.constant 0.000000e+00 : f32
    %112 = vector.broadcast %cst_41 : f32 to vector<8x256xf32>
    %113 = arith.select %29, %111, %112 : vector<8x256xi1>, vector<8x256xf32>
    %c3_i32_42 = arith.constant 3 : i32
    %114 = tpu.dynamic_rotate %101 by %c3_i32_42 dim 1 : vector<8x256xf32>, i32 -> vector<8x256xf32>
    %cst_43 = arith.constant 0.000000e+00 : f32
    %115 = vector.broadcast %cst_43 : f32 to vector<8x256xf32>
    %116 = arith.select %31, %114, %115 : vector<8x256xi1>, vector<8x256xf32>
    %c2_i32_44 = arith.constant 2 : i32
    %117 = tpu.dynamic_rotate %101 by %c2_i32_44 dim 1 : vector<8x256xf32>, i32 -> vector<8x256xf32>
    %cst_45 = arith.constant 0.000000e+00 : f32
    %118 = vector.broadcast %cst_45 : f32 to vector<8x256xf32>
    %119 = arith.select %33, %117, %118 : vector<8x256xi1>, vector<8x256xf32>
    %c1_i32_46 = arith.constant 1 : i32
    %120 = tpu.dynamic_rotate %101 by %c1_i32_46 dim 1 : vector<8x256xf32>, i32 -> vector<8x256xf32>
    %cst_47 = arith.constant 0.000000e+00 : f32
    %121 = vector.broadcast %cst_47 : f32 to vector<8x256xf32>
    %122 = arith.select %35, %120, %121 : vector<8x256xi1>, vector<8x256xf32>
    %c255_i32_48 = arith.constant 255 : i32
    %123 = tpu.dynamic_rotate %101 by %c255_i32_48 dim 1 : vector<8x256xf32>, i32 -> vector<8x256xf32>
    %cst_49 = arith.constant 0.000000e+00 : f32
    %124 = vector.broadcast %cst_49 : f32 to vector<8x256xf32>
    %125 = arith.select %37, %123, %124 : vector<8x256xi1>, vector<8x256xf32>
    %c254_i32_50 = arith.constant 254 : i32
    %126 = tpu.dynamic_rotate %101 by %c254_i32_50 dim 1 : vector<8x256xf32>, i32 -> vector<8x256xf32>
    %cst_51 = arith.constant 0.000000e+00 : f32
    %127 = vector.broadcast %cst_51 : f32 to vector<8x256xf32>
    %128 = arith.select %39, %126, %127 : vector<8x256xi1>, vector<8x256xf32>
    %c253_i32_52 = arith.constant 253 : i32
    %129 = tpu.dynamic_rotate %101 by %c253_i32_52 dim 1 : vector<8x256xf32>, i32 -> vector<8x256xf32>
    %cst_53 = arith.constant 0.000000e+00 : f32
    %130 = vector.broadcast %cst_53 : f32 to vector<8x256xf32>
    %131 = arith.select %41, %129, %130 : vector<8x256xi1>, vector<8x256xf32>
    %c252_i32_54 = arith.constant 252 : i32
    %132 = tpu.dynamic_rotate %101 by %c252_i32_54 dim 1 : vector<8x256xf32>, i32 -> vector<8x256xf32>
    %cst_55 = arith.constant 0.000000e+00 : f32
    %133 = vector.broadcast %cst_55 : f32 to vector<8x256xf32>
    %134 = arith.select %43, %132, %133 : vector<8x256xi1>, vector<8x256xf32>
    %c251_i32_56 = arith.constant 251 : i32
    %135 = tpu.dynamic_rotate %101 by %c251_i32_56 dim 1 : vector<8x256xf32>, i32 -> vector<8x256xf32>
    %cst_57 = arith.constant 0.000000e+00 : f32
    %136 = vector.broadcast %cst_57 : f32 to vector<8x256xf32>
    %137 = arith.select %45, %135, %136 : vector<8x256xi1>, vector<8x256xf32>
    %c250_i32_58 = arith.constant 250 : i32
    %138 = tpu.dynamic_rotate %101 by %c250_i32_58 dim 1 : vector<8x256xf32>, i32 -> vector<8x256xf32>
    %cst_59 = arith.constant 0.000000e+00 : f32
    %139 = vector.broadcast %cst_59 : f32 to vector<8x256xf32>
    %140 = arith.select %47, %138, %139 : vector<8x256xi1>, vector<8x256xf32>
    %c249_i32_60 = arith.constant 249 : i32
    %141 = tpu.dynamic_rotate %101 by %c249_i32_60 dim 1 : vector<8x256xf32>, i32 -> vector<8x256xf32>
    %cst_61 = arith.constant 0.000000e+00 : f32
    %142 = vector.broadcast %cst_61 : f32 to vector<8x256xf32>
    %143 = arith.select %49, %141, %142 : vector<8x256xi1>, vector<8x256xf32>
    %144 = tpu.concatenate %104, %107, %110, %113, %116, %119, %122, %101, %125, %128, %131, %134, %137, %140, %143 in 0 : vector<8x256xf32>, vector<8x256xf32>, vector<8x256xf32>, vector<8x256xf32>, vector<8x256xf32>, vector<8x256xf32>, vector<8x256xf32>, vector<8x256xf32>, vector<8x256xf32>, vector<8x256xf32>, vector<8x256xf32>, vector<8x256xf32>, vector<8x256xf32>, vector<8x256xf32>, vector<8x256xf32> -> vector<120x256xf32>
    %c0_62 = arith.constant 0 : index
    %c0_63 = arith.constant 0 : index
    %c0_64 = arith.constant 0 : index
    %145 = vector.load %arg3[%c0_62, %c0_63, %c0_64] : memref<6x8x120xf32, #tpu.memory_space<vmem>>, vector<1x8x120xf32>
    %146 = vector.shape_cast %145 : vector<1x8x120xf32> to vector<8x120xf32>
    %cst_65 = arith.constant dense<0.000000e+00> : vector<8x256xf32>
    %147 = tpu.matmul %146, %144, %cst_65 {dimension_numbers = #tpu.dot_dimension_numbers<[1], [0], [0], [1], [0, 0, 1, 1], [], []>} : vector<8x120xf32>, vector<120x256xf32>, vector<8x256xf32> -> vector<8x256xf32>
    %c0_66 = arith.constant 0 : index
    %c0_67 = arith.constant 0 : index
    %c0_68 = arith.constant 0 : index
    %148 = vector.load %arg5[%c0_66, %c0_67, %c0_68] : memref<6x8x1xf32, #tpu.memory_space<vmem>>, vector<1x8x1xf32>
    %149 = vector.shape_cast %148 : vector<1x8x1xf32> to vector<8x1xf32>
    %150 = vector.broadcast %149 : vector<8x1xf32> to vector<8x256xf32>
    %151 = arith.addf %147, %150 : vector<8x256xf32>
    %cst_69 = arith.constant 2.000000e-01 : f32
    %152 = vector.broadcast %cst_69 : f32 to vector<8x256xf32>
    %153 = arith.mulf %152, %151 : vector<8x256xf32>
    %154 = arith.maximumf %151, %153 : vector<8x256xf32>
    %c7_i32_70 = arith.constant 7 : i32
    %155 = tpu.dynamic_rotate %154 by %c7_i32_70 dim 1 : vector<8x256xf32>, i32 -> vector<8x256xf32>
    %cst_71 = arith.constant 0.000000e+00 : f32
    %156 = vector.broadcast %cst_71 : f32 to vector<8x256xf32>
    %157 = arith.select %23, %155, %156 : vector<8x256xi1>, vector<8x256xf32>
    %c6_i32_72 = arith.constant 6 : i32
    %158 = tpu.dynamic_rotate %154 by %c6_i32_72 dim 1 : vector<8x256xf32>, i32 -> vector<8x256xf32>
    %cst_73 = arith.constant 0.000000e+00 : f32
    %159 = vector.broadcast %cst_73 : f32 to vector<8x256xf32>
    %160 = arith.select %25, %158, %159 : vector<8x256xi1>, vector<8x256xf32>
    %c5_i32_74 = arith.constant 5 : i32
    %161 = tpu.dynamic_rotate %154 by %c5_i32_74 dim 1 : vector<8x256xf32>, i32 -> vector<8x256xf32>
    %cst_75 = arith.constant 0.000000e+00 : f32
    %162 = vector.broadcast %cst_75 : f32 to vector<8x256xf32>
    %163 = arith.select %27, %161, %162 : vector<8x256xi1>, vector<8x256xf32>
    %c4_i32_76 = arith.constant 4 : i32
    %164 = tpu.dynamic_rotate %154 by %c4_i32_76 dim 1 : vector<8x256xf32>, i32 -> vector<8x256xf32>
    %cst_77 = arith.constant 0.000000e+00 : f32
    %165 = vector.broadcast %cst_77 : f32 to vector<8x256xf32>
    %166 = arith.select %29, %164, %165 : vector<8x256xi1>, vector<8x256xf32>
    %c3_i32_78 = arith.constant 3 : i32
    %167 = tpu.dynamic_rotate %154 by %c3_i32_78 dim 1 : vector<8x256xf32>, i32 -> vector<8x256xf32>
    %cst_79 = arith.constant 0.000000e+00 : f32
    %168 = vector.broadcast %cst_79 : f32 to vector<8x256xf32>
    %169 = arith.select %31, %167, %168 : vector<8x256xi1>, vector<8x256xf32>
    %c2_i32_80 = arith.constant 2 : i32
    %170 = tpu.dynamic_rotate %154 by %c2_i32_80 dim 1 : vector<8x256xf32>, i32 -> vector<8x256xf32>
    %cst_81 = arith.constant 0.000000e+00 : f32
    %171 = vector.broadcast %cst_81 : f32 to vector<8x256xf32>
    %172 = arith.select %33, %170, %171 : vector<8x256xi1>, vector<8x256xf32>
    %c1_i32_82 = arith.constant 1 : i32
    %173 = tpu.dynamic_rotate %154 by %c1_i32_82 dim 1 : vector<8x256xf32>, i32 -> vector<8x256xf32>
    %cst_83 = arith.constant 0.000000e+00 : f32
    %174 = vector.broadcast %cst_83 : f32 to vector<8x256xf32>
    %175 = arith.select %35, %173, %174 : vector<8x256xi1>, vector<8x256xf32>
    %c255_i32_84 = arith.constant 255 : i32
    %176 = tpu.dynamic_rotate %154 by %c255_i32_84 dim 1 : vector<8x256xf32>, i32 -> vector<8x256xf32>
    %cst_85 = arith.constant 0.000000e+00 : f32
    %177 = vector.broadcast %cst_85 : f32 to vector<8x256xf32>
    %178 = arith.select %37, %176, %177 : vector<8x256xi1>, vector<8x256xf32>
    %c254_i32_86 = arith.constant 254 : i32
    %179 = tpu.dynamic_rotate %154 by %c254_i32_86 dim 1 : vector<8x256xf32>, i32 -> vector<8x256xf32>
    %cst_87 = arith.constant 0.000000e+00 : f32
    %180 = vector.broadcast %cst_87 : f32 to vector<8x256xf32>
    %181 = arith.select %39, %179, %180 : vector<8x256xi1>, vector<8x256xf32>
    %c253_i32_88 = arith.constant 253 : i32
    %182 = tpu.dynamic_rotate %154 by %c253_i32_88 dim 1 : vector<8x256xf32>, i32 -> vector<8x256xf32>
    %cst_89 = arith.constant 0.000000e+00 : f32
    %183 = vector.broadcast %cst_89 : f32 to vector<8x256xf32>
    %184 = arith.select %41, %182, %183 : vector<8x256xi1>, vector<8x256xf32>
    %c252_i32_90 = arith.constant 252 : i32
    %185 = tpu.dynamic_rotate %154 by %c252_i32_90 dim 1 : vector<8x256xf32>, i32 -> vector<8x256xf32>
    %cst_91 = arith.constant 0.000000e+00 : f32
    %186 = vector.broadcast %cst_91 : f32 to vector<8x256xf32>
    %187 = arith.select %43, %185, %186 : vector<8x256xi1>, vector<8x256xf32>
    %c251_i32_92 = arith.constant 251 : i32
    %188 = tpu.dynamic_rotate %154 by %c251_i32_92 dim 1 : vector<8x256xf32>, i32 -> vector<8x256xf32>
    %cst_93 = arith.constant 0.000000e+00 : f32
    %189 = vector.broadcast %cst_93 : f32 to vector<8x256xf32>
    %190 = arith.select %45, %188, %189 : vector<8x256xi1>, vector<8x256xf32>
    %c250_i32_94 = arith.constant 250 : i32
    %191 = tpu.dynamic_rotate %154 by %c250_i32_94 dim 1 : vector<8x256xf32>, i32 -> vector<8x256xf32>
    %cst_95 = arith.constant 0.000000e+00 : f32
    %192 = vector.broadcast %cst_95 : f32 to vector<8x256xf32>
    %193 = arith.select %47, %191, %192 : vector<8x256xi1>, vector<8x256xf32>
    %c249_i32_96 = arith.constant 249 : i32
    %194 = tpu.dynamic_rotate %154 by %c249_i32_96 dim 1 : vector<8x256xf32>, i32 -> vector<8x256xf32>
    %cst_97 = arith.constant 0.000000e+00 : f32
    %195 = vector.broadcast %cst_97 : f32 to vector<8x256xf32>
    %196 = arith.select %49, %194, %195 : vector<8x256xi1>, vector<8x256xf32>
    %197 = tpu.concatenate %157, %160, %163, %166, %169, %172, %175, %154, %178, %181, %184, %187, %190, %193, %196 in 0 : vector<8x256xf32>, vector<8x256xf32>, vector<8x256xf32>, vector<8x256xf32>, vector<8x256xf32>, vector<8x256xf32>, vector<8x256xf32>, vector<8x256xf32>, vector<8x256xf32>, vector<8x256xf32>, vector<8x256xf32>, vector<8x256xf32>, vector<8x256xf32>, vector<8x256xf32>, vector<8x256xf32> -> vector<120x256xf32>
    %c1_98 = arith.constant 1 : index
    %c0_99 = arith.constant 0 : index
    %c0_100 = arith.constant 0 : index
    %198 = vector.load %arg3[%c1_98, %c0_99, %c0_100] : memref<6x8x120xf32, #tpu.memory_space<vmem>>, vector<1x8x120xf32>
    %199 = vector.shape_cast %198 : vector<1x8x120xf32> to vector<8x120xf32>
    %cst_101 = arith.constant dense<0.000000e+00> : vector<8x256xf32>
    %200 = tpu.matmul %199, %197, %cst_101 {dimension_numbers = #tpu.dot_dimension_numbers<[1], [0], [0], [1], [0, 0, 1, 1], [], []>} : vector<8x120xf32>, vector<120x256xf32>, vector<8x256xf32> -> vector<8x256xf32>
    %c1_102 = arith.constant 1 : index
    %c0_103 = arith.constant 0 : index
    %c0_104 = arith.constant 0 : index
    %201 = vector.load %arg5[%c1_102, %c0_103, %c0_104] : memref<6x8x1xf32, #tpu.memory_space<vmem>>, vector<1x8x1xf32>
    %202 = vector.shape_cast %201 : vector<1x8x1xf32> to vector<8x1xf32>
    %203 = vector.broadcast %202 : vector<8x1xf32> to vector<8x256xf32>
    %204 = arith.addf %200, %203 : vector<8x256xf32>
    %cst_105 = arith.constant 2.000000e-01 : f32
    %205 = vector.broadcast %cst_105 : f32 to vector<8x256xf32>
    %206 = arith.mulf %205, %204 : vector<8x256xf32>
    %207 = arith.maximumf %204, %206 : vector<8x256xf32>
    %c7_i32_106 = arith.constant 7 : i32
    %208 = tpu.dynamic_rotate %207 by %c7_i32_106 dim 1 : vector<8x256xf32>, i32 -> vector<8x256xf32>
    %cst_107 = arith.constant 0.000000e+00 : f32
    %209 = vector.broadcast %cst_107 : f32 to vector<8x256xf32>
    %210 = arith.select %23, %208, %209 : vector<8x256xi1>, vector<8x256xf32>
    %c6_i32_108 = arith.constant 6 : i32
    %211 = tpu.dynamic_rotate %207 by %c6_i32_108 dim 1 : vector<8x256xf32>, i32 -> vector<8x256xf32>
    %cst_109 = arith.constant 0.000000e+00 : f32
    %212 = vector.broadcast %cst_109 : f32 to vector<8x256xf32>
    %213 = arith.select %25, %211, %212 : vector<8x256xi1>, vector<8x256xf32>
    %c5_i32_110 = arith.constant 5 : i32
    %214 = tpu.dynamic_rotate %207 by %c5_i32_110 dim 1 : vector<8x256xf32>, i32 -> vector<8x256xf32>
    %cst_111 = arith.constant 0.000000e+00 : f32
    %215 = vector.broadcast %cst_111 : f32 to vector<8x256xf32>
    %216 = arith.select %27, %214, %215 : vector<8x256xi1>, vector<8x256xf32>
    %c4_i32_112 = arith.constant 4 : i32
    %217 = tpu.dynamic_rotate %207 by %c4_i32_112 dim 1 : vector<8x256xf32>, i32 -> vector<8x256xf32>
    %cst_113 = arith.constant 0.000000e+00 : f32
    %218 = vector.broadcast %cst_113 : f32 to vector<8x256xf32>
    %219 = arith.select %29, %217, %218 : vector<8x256xi1>, vector<8x256xf32>
    %c3_i32_114 = arith.constant 3 : i32
    %220 = tpu.dynamic_rotate %207 by %c3_i32_114 dim 1 : vector<8x256xf32>, i32 -> vector<8x256xf32>
    %cst_115 = arith.constant 0.000000e+00 : f32
    %221 = vector.broadcast %cst_115 : f32 to vector<8x256xf32>
    %222 = arith.select %31, %220, %221 : vector<8x256xi1>, vector<8x256xf32>
    %c2_i32_116 = arith.constant 2 : i32
    %223 = tpu.dynamic_rotate %207 by %c2_i32_116 dim 1 : vector<8x256xf32>, i32 -> vector<8x256xf32>
    %cst_117 = arith.constant 0.000000e+00 : f32
    %224 = vector.broadcast %cst_117 : f32 to vector<8x256xf32>
    %225 = arith.select %33, %223, %224 : vector<8x256xi1>, vector<8x256xf32>
    %c1_i32_118 = arith.constant 1 : i32
    %226 = tpu.dynamic_rotate %207 by %c1_i32_118 dim 1 : vector<8x256xf32>, i32 -> vector<8x256xf32>
    %cst_119 = arith.constant 0.000000e+00 : f32
    %227 = vector.broadcast %cst_119 : f32 to vector<8x256xf32>
    %228 = arith.select %35, %226, %227 : vector<8x256xi1>, vector<8x256xf32>
    %c255_i32_120 = arith.constant 255 : i32
    %229 = tpu.dynamic_rotate %207 by %c255_i32_120 dim 1 : vector<8x256xf32>, i32 -> vector<8x256xf32>
    %cst_121 = arith.constant 0.000000e+00 : f32
    %230 = vector.broadcast %cst_121 : f32 to vector<8x256xf32>
    %231 = arith.select %37, %229, %230 : vector<8x256xi1>, vector<8x256xf32>
    %c254_i32_122 = arith.constant 254 : i32
    %232 = tpu.dynamic_rotate %207 by %c254_i32_122 dim 1 : vector<8x256xf32>, i32 -> vector<8x256xf32>
    %cst_123 = arith.constant 0.000000e+00 : f32
    %233 = vector.broadcast %cst_123 : f32 to vector<8x256xf32>
    %234 = arith.select %39, %232, %233 : vector<8x256xi1>, vector<8x256xf32>
    %c253_i32_124 = arith.constant 253 : i32
    %235 = tpu.dynamic_rotate %207 by %c253_i32_124 dim 1 : vector<8x256xf32>, i32 -> vector<8x256xf32>
    %cst_125 = arith.constant 0.000000e+00 : f32
    %236 = vector.broadcast %cst_125 : f32 to vector<8x256xf32>
    %237 = arith.select %41, %235, %236 : vector<8x256xi1>, vector<8x256xf32>
    %c252_i32_126 = arith.constant 252 : i32
    %238 = tpu.dynamic_rotate %207 by %c252_i32_126 dim 1 : vector<8x256xf32>, i32 -> vector<8x256xf32>
    %cst_127 = arith.constant 0.000000e+00 : f32
    %239 = vector.broadcast %cst_127 : f32 to vector<8x256xf32>
    %240 = arith.select %43, %238, %239 : vector<8x256xi1>, vector<8x256xf32>
    %c251_i32_128 = arith.constant 251 : i32
    %241 = tpu.dynamic_rotate %207 by %c251_i32_128 dim 1 : vector<8x256xf32>, i32 -> vector<8x256xf32>
    %cst_129 = arith.constant 0.000000e+00 : f32
    %242 = vector.broadcast %cst_129 : f32 to vector<8x256xf32>
    %243 = arith.select %45, %241, %242 : vector<8x256xi1>, vector<8x256xf32>
    %c250_i32_130 = arith.constant 250 : i32
    %244 = tpu.dynamic_rotate %207 by %c250_i32_130 dim 1 : vector<8x256xf32>, i32 -> vector<8x256xf32>
    %cst_131 = arith.constant 0.000000e+00 : f32
    %245 = vector.broadcast %cst_131 : f32 to vector<8x256xf32>
    %246 = arith.select %47, %244, %245 : vector<8x256xi1>, vector<8x256xf32>
    %c249_i32_132 = arith.constant 249 : i32
    %247 = tpu.dynamic_rotate %207 by %c249_i32_132 dim 1 : vector<8x256xf32>, i32 -> vector<8x256xf32>
    %cst_133 = arith.constant 0.000000e+00 : f32
    %248 = vector.broadcast %cst_133 : f32 to vector<8x256xf32>
    %249 = arith.select %49, %247, %248 : vector<8x256xi1>, vector<8x256xf32>
    %250 = tpu.concatenate %210, %213, %216, %219, %222, %225, %228, %207, %231, %234, %237, %240, %243, %246, %249 in 0 : vector<8x256xf32>, vector<8x256xf32>, vector<8x256xf32>, vector<8x256xf32>, vector<8x256xf32>, vector<8x256xf32>, vector<8x256xf32>, vector<8x256xf32>, vector<8x256xf32>, vector<8x256xf32>, vector<8x256xf32>, vector<8x256xf32>, vector<8x256xf32>, vector<8x256xf32>, vector<8x256xf32> -> vector<120x256xf32>
    %c2 = arith.constant 2 : index
    %c0_134 = arith.constant 0 : index
    %c0_135 = arith.constant 0 : index
    %251 = vector.load %arg3[%c2, %c0_134, %c0_135] : memref<6x8x120xf32, #tpu.memory_space<vmem>>, vector<1x8x120xf32>
    %252 = vector.shape_cast %251 : vector<1x8x120xf32> to vector<8x120xf32>
    %cst_136 = arith.constant dense<0.000000e+00> : vector<8x256xf32>
    %253 = tpu.matmul %252, %250, %cst_136 {dimension_numbers = #tpu.dot_dimension_numbers<[1], [0], [0], [1], [0, 0, 1, 1], [], []>} : vector<8x120xf32>, vector<120x256xf32>, vector<8x256xf32> -> vector<8x256xf32>
    %c2_137 = arith.constant 2 : index
    %c0_138 = arith.constant 0 : index
    %c0_139 = arith.constant 0 : index
    %254 = vector.load %arg5[%c2_137, %c0_138, %c0_139] : memref<6x8x1xf32, #tpu.memory_space<vmem>>, vector<1x8x1xf32>
    %255 = vector.shape_cast %254 : vector<1x8x1xf32> to vector<8x1xf32>
    %256 = vector.broadcast %255 : vector<8x1xf32> to vector<8x256xf32>
    %257 = arith.addf %253, %256 : vector<8x256xf32>
    %258 = vector.extract_strided_slice %97 {offsets = [8, 0], sizes = [8, 256], strides = [1, 1]} : vector<16x256xf32> to vector<8x256xf32>
    %cst_140 = arith.constant 2.000000e-01 : f32
    %259 = vector.broadcast %cst_140 : f32 to vector<8x256xf32>
    %260 = arith.mulf %259, %258 : vector<8x256xf32>
    %261 = arith.maximumf %258, %260 : vector<8x256xf32>
    %c7_i32_141 = arith.constant 7 : i32
    %262 = tpu.dynamic_rotate %261 by %c7_i32_141 dim 1 : vector<8x256xf32>, i32 -> vector<8x256xf32>
    %cst_142 = arith.constant 0.000000e+00 : f32
    %263 = vector.broadcast %cst_142 : f32 to vector<8x256xf32>
    %264 = arith.select %23, %262, %263 : vector<8x256xi1>, vector<8x256xf32>
    %c6_i32_143 = arith.constant 6 : i32
    %265 = tpu.dynamic_rotate %261 by %c6_i32_143 dim 1 : vector<8x256xf32>, i32 -> vector<8x256xf32>
    %cst_144 = arith.constant 0.000000e+00 : f32
    %266 = vector.broadcast %cst_144 : f32 to vector<8x256xf32>
    %267 = arith.select %25, %265, %266 : vector<8x256xi1>, vector<8x256xf32>
    %c5_i32_145 = arith.constant 5 : i32
    %268 = tpu.dynamic_rotate %261 by %c5_i32_145 dim 1 : vector<8x256xf32>, i32 -> vector<8x256xf32>
    %cst_146 = arith.constant 0.000000e+00 : f32
    %269 = vector.broadcast %cst_146 : f32 to vector<8x256xf32>
    %270 = arith.select %27, %268, %269 : vector<8x256xi1>, vector<8x256xf32>
    %c4_i32_147 = arith.constant 4 : i32
    %271 = tpu.dynamic_rotate %261 by %c4_i32_147 dim 1 : vector<8x256xf32>, i32 -> vector<8x256xf32>
    %cst_148 = arith.constant 0.000000e+00 : f32
    %272 = vector.broadcast %cst_148 : f32 to vector<8x256xf32>
    %273 = arith.select %29, %271, %272 : vector<8x256xi1>, vector<8x256xf32>
    %c3_i32_149 = arith.constant 3 : i32
    %274 = tpu.dynamic_rotate %261 by %c3_i32_149 dim 1 : vector<8x256xf32>, i32 -> vector<8x256xf32>
    %cst_150 = arith.constant 0.000000e+00 : f32
    %275 = vector.broadcast %cst_150 : f32 to vector<8x256xf32>
    %276 = arith.select %31, %274, %275 : vector<8x256xi1>, vector<8x256xf32>
    %c2_i32_151 = arith.constant 2 : i32
    %277 = tpu.dynamic_rotate %261 by %c2_i32_151 dim 1 : vector<8x256xf32>, i32 -> vector<8x256xf32>
    %cst_152 = arith.constant 0.000000e+00 : f32
    %278 = vector.broadcast %cst_152 : f32 to vector<8x256xf32>
    %279 = arith.select %33, %277, %278 : vector<8x256xi1>, vector<8x256xf32>
    %c1_i32_153 = arith.constant 1 : i32
    %280 = tpu.dynamic_rotate %261 by %c1_i32_153 dim 1 : vector<8x256xf32>, i32 -> vector<8x256xf32>
    %cst_154 = arith.constant 0.000000e+00 : f32
    %281 = vector.broadcast %cst_154 : f32 to vector<8x256xf32>
    %282 = arith.select %35, %280, %281 : vector<8x256xi1>, vector<8x256xf32>
    %c255_i32_155 = arith.constant 255 : i32
    %283 = tpu.dynamic_rotate %261 by %c255_i32_155 dim 1 : vector<8x256xf32>, i32 -> vector<8x256xf32>
    %cst_156 = arith.constant 0.000000e+00 : f32
    %284 = vector.broadcast %cst_156 : f32 to vector<8x256xf32>
    %285 = arith.select %37, %283, %284 : vector<8x256xi1>, vector<8x256xf32>
    %c254_i32_157 = arith.constant 254 : i32
    %286 = tpu.dynamic_rotate %261 by %c254_i32_157 dim 1 : vector<8x256xf32>, i32 -> vector<8x256xf32>
    %cst_158 = arith.constant 0.000000e+00 : f32
    %287 = vector.broadcast %cst_158 : f32 to vector<8x256xf32>
    %288 = arith.select %39, %286, %287 : vector<8x256xi1>, vector<8x256xf32>
    %c253_i32_159 = arith.constant 253 : i32
    %289 = tpu.dynamic_rotate %261 by %c253_i32_159 dim 1 : vector<8x256xf32>, i32 -> vector<8x256xf32>
    %cst_160 = arith.constant 0.000000e+00 : f32
    %290 = vector.broadcast %cst_160 : f32 to vector<8x256xf32>
    %291 = arith.select %41, %289, %290 : vector<8x256xi1>, vector<8x256xf32>
    %c252_i32_161 = arith.constant 252 : i32
    %292 = tpu.dynamic_rotate %261 by %c252_i32_161 dim 1 : vector<8x256xf32>, i32 -> vector<8x256xf32>
    %cst_162 = arith.constant 0.000000e+00 : f32
    %293 = vector.broadcast %cst_162 : f32 to vector<8x256xf32>
    %294 = arith.select %43, %292, %293 : vector<8x256xi1>, vector<8x256xf32>
    %c251_i32_163 = arith.constant 251 : i32
    %295 = tpu.dynamic_rotate %261 by %c251_i32_163 dim 1 : vector<8x256xf32>, i32 -> vector<8x256xf32>
    %cst_164 = arith.constant 0.000000e+00 : f32
    %296 = vector.broadcast %cst_164 : f32 to vector<8x256xf32>
    %297 = arith.select %45, %295, %296 : vector<8x256xi1>, vector<8x256xf32>
    %c250_i32_165 = arith.constant 250 : i32
    %298 = tpu.dynamic_rotate %261 by %c250_i32_165 dim 1 : vector<8x256xf32>, i32 -> vector<8x256xf32>
    %cst_166 = arith.constant 0.000000e+00 : f32
    %299 = vector.broadcast %cst_166 : f32 to vector<8x256xf32>
    %300 = arith.select %47, %298, %299 : vector<8x256xi1>, vector<8x256xf32>
    %c249_i32_167 = arith.constant 249 : i32
    %301 = tpu.dynamic_rotate %261 by %c249_i32_167 dim 1 : vector<8x256xf32>, i32 -> vector<8x256xf32>
    %cst_168 = arith.constant 0.000000e+00 : f32
    %302 = vector.broadcast %cst_168 : f32 to vector<8x256xf32>
    %303 = arith.select %49, %301, %302 : vector<8x256xi1>, vector<8x256xf32>
    %304 = tpu.concatenate %264, %267, %270, %273, %276, %279, %282, %261, %285, %288, %291, %294, %297, %300, %303 in 0 : vector<8x256xf32>, vector<8x256xf32>, vector<8x256xf32>, vector<8x256xf32>, vector<8x256xf32>, vector<8x256xf32>, vector<8x256xf32>, vector<8x256xf32>, vector<8x256xf32>, vector<8x256xf32>, vector<8x256xf32>, vector<8x256xf32>, vector<8x256xf32>, vector<8x256xf32>, vector<8x256xf32> -> vector<120x256xf32>
    %c3 = arith.constant 3 : index
    %c0_169 = arith.constant 0 : index
    %c0_170 = arith.constant 0 : index
    %305 = vector.load %arg3[%c3, %c0_169, %c0_170] : memref<6x8x120xf32, #tpu.memory_space<vmem>>, vector<1x8x120xf32>
    %306 = vector.shape_cast %305 : vector<1x8x120xf32> to vector<8x120xf32>
    %cst_171 = arith.constant dense<0.000000e+00> : vector<8x256xf32>
    %307 = tpu.matmul %306, %304, %cst_171 {dimension_numbers = #tpu.dot_dimension_numbers<[1], [0], [0], [1], [0, 0, 1, 1], [], []>} : vector<8x120xf32>, vector<120x256xf32>, vector<8x256xf32> -> vector<8x256xf32>
    %c3_172 = arith.constant 3 : index
    %c0_173 = arith.constant 0 : index
    %c0_174 = arith.constant 0 : index
    %308 = vector.load %arg5[%c3_172, %c0_173, %c0_174] : memref<6x8x1xf32, #tpu.memory_space<vmem>>, vector<1x8x1xf32>
    %309 = vector.shape_cast %308 : vector<1x8x1xf32> to vector<8x1xf32>
    %310 = vector.broadcast %309 : vector<8x1xf32> to vector<8x256xf32>
    %311 = arith.addf %307, %310 : vector<8x256xf32>
    %cst_175 = arith.constant 2.000000e-01 : f32
    %312 = vector.broadcast %cst_175 : f32 to vector<8x256xf32>
    %313 = arith.mulf %312, %311 : vector<8x256xf32>
    %314 = arith.maximumf %311, %313 : vector<8x256xf32>
    %c7_i32_176 = arith.constant 7 : i32
    %315 = tpu.dynamic_rotate %314 by %c7_i32_176 dim 1 : vector<8x256xf32>, i32 -> vector<8x256xf32>
    %cst_177 = arith.constant 0.000000e+00 : f32
    %316 = vector.broadcast %cst_177 : f32 to vector<8x256xf32>
    %317 = arith.select %23, %315, %316 : vector<8x256xi1>, vector<8x256xf32>
    %c6_i32_178 = arith.constant 6 : i32
    %318 = tpu.dynamic_rotate %314 by %c6_i32_178 dim 1 : vector<8x256xf32>, i32 -> vector<8x256xf32>
    %cst_179 = arith.constant 0.000000e+00 : f32
    %319 = vector.broadcast %cst_179 : f32 to vector<8x256xf32>
    %320 = arith.select %25, %318, %319 : vector<8x256xi1>, vector<8x256xf32>
    %c5_i32_180 = arith.constant 5 : i32
    %321 = tpu.dynamic_rotate %314 by %c5_i32_180 dim 1 : vector<8x256xf32>, i32 -> vector<8x256xf32>
    %cst_181 = arith.constant 0.000000e+00 : f32
    %322 = vector.broadcast %cst_181 : f32 to vector<8x256xf32>
    %323 = arith.select %27, %321, %322 : vector<8x256xi1>, vector<8x256xf32>
    %c4_i32_182 = arith.constant 4 : i32
    %324 = tpu.dynamic_rotate %314 by %c4_i32_182 dim 1 : vector<8x256xf32>, i32 -> vector<8x256xf32>
    %cst_183 = arith.constant 0.000000e+00 : f32
    %325 = vector.broadcast %cst_183 : f32 to vector<8x256xf32>
    %326 = arith.select %29, %324, %325 : vector<8x256xi1>, vector<8x256xf32>
    %c3_i32_184 = arith.constant 3 : i32
    %327 = tpu.dynamic_rotate %314 by %c3_i32_184 dim 1 : vector<8x256xf32>, i32 -> vector<8x256xf32>
    %cst_185 = arith.constant 0.000000e+00 : f32
    %328 = vector.broadcast %cst_185 : f32 to vector<8x256xf32>
    %329 = arith.select %31, %327, %328 : vector<8x256xi1>, vector<8x256xf32>
    %c2_i32_186 = arith.constant 2 : i32
    %330 = tpu.dynamic_rotate %314 by %c2_i32_186 dim 1 : vector<8x256xf32>, i32 -> vector<8x256xf32>
    %cst_187 = arith.constant 0.000000e+00 : f32
    %331 = vector.broadcast %cst_187 : f32 to vector<8x256xf32>
    %332 = arith.select %33, %330, %331 : vector<8x256xi1>, vector<8x256xf32>
    %c1_i32_188 = arith.constant 1 : i32
    %333 = tpu.dynamic_rotate %314 by %c1_i32_188 dim 1 : vector<8x256xf32>, i32 -> vector<8x256xf32>
    %cst_189 = arith.constant 0.000000e+00 : f32
    %334 = vector.broadcast %cst_189 : f32 to vector<8x256xf32>
    %335 = arith.select %35, %333, %334 : vector<8x256xi1>, vector<8x256xf32>
    %c255_i32_190 = arith.constant 255 : i32
    %336 = tpu.dynamic_rotate %314 by %c255_i32_190 dim 1 : vector<8x256xf32>, i32 -> vector<8x256xf32>
    %cst_191 = arith.constant 0.000000e+00 : f32
    %337 = vector.broadcast %cst_191 : f32 to vector<8x256xf32>
    %338 = arith.select %37, %336, %337 : vector<8x256xi1>, vector<8x256xf32>
    %c254_i32_192 = arith.constant 254 : i32
    %339 = tpu.dynamic_rotate %314 by %c254_i32_192 dim 1 : vector<8x256xf32>, i32 -> vector<8x256xf32>
    %cst_193 = arith.constant 0.000000e+00 : f32
    %340 = vector.broadcast %cst_193 : f32 to vector<8x256xf32>
    %341 = arith.select %39, %339, %340 : vector<8x256xi1>, vector<8x256xf32>
    %c253_i32_194 = arith.constant 253 : i32
    %342 = tpu.dynamic_rotate %314 by %c253_i32_194 dim 1 : vector<8x256xf32>, i32 -> vector<8x256xf32>
    %cst_195 = arith.constant 0.000000e+00 : f32
    %343 = vector.broadcast %cst_195 : f32 to vector<8x256xf32>
    %344 = arith.select %41, %342, %343 : vector<8x256xi1>, vector<8x256xf32>
    %c252_i32_196 = arith.constant 252 : i32
    %345 = tpu.dynamic_rotate %314 by %c252_i32_196 dim 1 : vector<8x256xf32>, i32 -> vector<8x256xf32>
    %cst_197 = arith.constant 0.000000e+00 : f32
    %346 = vector.broadcast %cst_197 : f32 to vector<8x256xf32>
    %347 = arith.select %43, %345, %346 : vector<8x256xi1>, vector<8x256xf32>
    %c251_i32_198 = arith.constant 251 : i32
    %348 = tpu.dynamic_rotate %314 by %c251_i32_198 dim 1 : vector<8x256xf32>, i32 -> vector<8x256xf32>
    %cst_199 = arith.constant 0.000000e+00 : f32
    %349 = vector.broadcast %cst_199 : f32 to vector<8x256xf32>
    %350 = arith.select %45, %348, %349 : vector<8x256xi1>, vector<8x256xf32>
    %c250_i32_200 = arith.constant 250 : i32
    %351 = tpu.dynamic_rotate %314 by %c250_i32_200 dim 1 : vector<8x256xf32>, i32 -> vector<8x256xf32>
    %cst_201 = arith.constant 0.000000e+00 : f32
    %352 = vector.broadcast %cst_201 : f32 to vector<8x256xf32>
    %353 = arith.select %47, %351, %352 : vector<8x256xi1>, vector<8x256xf32>
    %c249_i32_202 = arith.constant 249 : i32
    %354 = tpu.dynamic_rotate %314 by %c249_i32_202 dim 1 : vector<8x256xf32>, i32 -> vector<8x256xf32>
    %cst_203 = arith.constant 0.000000e+00 : f32
    %355 = vector.broadcast %cst_203 : f32 to vector<8x256xf32>
    %356 = arith.select %49, %354, %355 : vector<8x256xi1>, vector<8x256xf32>
    %357 = tpu.concatenate %317, %320, %323, %326, %329, %332, %335, %314, %338, %341, %344, %347, %350, %353, %356 in 0 : vector<8x256xf32>, vector<8x256xf32>, vector<8x256xf32>, vector<8x256xf32>, vector<8x256xf32>, vector<8x256xf32>, vector<8x256xf32>, vector<8x256xf32>, vector<8x256xf32>, vector<8x256xf32>, vector<8x256xf32>, vector<8x256xf32>, vector<8x256xf32>, vector<8x256xf32>, vector<8x256xf32> -> vector<120x256xf32>
    %c4 = arith.constant 4 : index
    %c0_204 = arith.constant 0 : index
    %c0_205 = arith.constant 0 : index
    %358 = vector.load %arg3[%c4, %c0_204, %c0_205] : memref<6x8x120xf32, #tpu.memory_space<vmem>>, vector<1x8x120xf32>
    %359 = vector.shape_cast %358 : vector<1x8x120xf32> to vector<8x120xf32>
    %cst_206 = arith.constant dense<0.000000e+00> : vector<8x256xf32>
    %360 = tpu.matmul %359, %357, %cst_206 {dimension_numbers = #tpu.dot_dimension_numbers<[1], [0], [0], [1], [0, 0, 1, 1], [], []>} : vector<8x120xf32>, vector<120x256xf32>, vector<8x256xf32> -> vector<8x256xf32>
    %c4_207 = arith.constant 4 : index
    %c0_208 = arith.constant 0 : index
    %c0_209 = arith.constant 0 : index
    %361 = vector.load %arg5[%c4_207, %c0_208, %c0_209] : memref<6x8x1xf32, #tpu.memory_space<vmem>>, vector<1x8x1xf32>
    %362 = vector.shape_cast %361 : vector<1x8x1xf32> to vector<8x1xf32>
    %363 = vector.broadcast %362 : vector<8x1xf32> to vector<8x256xf32>
    %364 = arith.addf %360, %363 : vector<8x256xf32>
    %cst_210 = arith.constant 2.000000e-01 : f32
    %365 = vector.broadcast %cst_210 : f32 to vector<8x256xf32>
    %366 = arith.mulf %365, %364 : vector<8x256xf32>
    %367 = arith.maximumf %364, %366 : vector<8x256xf32>
    %c7_i32_211 = arith.constant 7 : i32
    %368 = tpu.dynamic_rotate %367 by %c7_i32_211 dim 1 : vector<8x256xf32>, i32 -> vector<8x256xf32>
    %cst_212 = arith.constant 0.000000e+00 : f32
    %369 = vector.broadcast %cst_212 : f32 to vector<8x256xf32>
    %370 = arith.select %23, %368, %369 : vector<8x256xi1>, vector<8x256xf32>
    %c6_i32_213 = arith.constant 6 : i32
    %371 = tpu.dynamic_rotate %367 by %c6_i32_213 dim 1 : vector<8x256xf32>, i32 -> vector<8x256xf32>
    %cst_214 = arith.constant 0.000000e+00 : f32
    %372 = vector.broadcast %cst_214 : f32 to vector<8x256xf32>
    %373 = arith.select %25, %371, %372 : vector<8x256xi1>, vector<8x256xf32>
    %c5_i32_215 = arith.constant 5 : i32
    %374 = tpu.dynamic_rotate %367 by %c5_i32_215 dim 1 : vector<8x256xf32>, i32 -> vector<8x256xf32>
    %cst_216 = arith.constant 0.000000e+00 : f32
    %375 = vector.broadcast %cst_216 : f32 to vector<8x256xf32>
    %376 = arith.select %27, %374, %375 : vector<8x256xi1>, vector<8x256xf32>
    %c4_i32_217 = arith.constant 4 : i32
    %377 = tpu.dynamic_rotate %367 by %c4_i32_217 dim 1 : vector<8x256xf32>, i32 -> vector<8x256xf32>
    %cst_218 = arith.constant 0.000000e+00 : f32
    %378 = vector.broadcast %cst_218 : f32 to vector<8x256xf32>
    %379 = arith.select %29, %377, %378 : vector<8x256xi1>, vector<8x256xf32>
    %c3_i32_219 = arith.constant 3 : i32
    %380 = tpu.dynamic_rotate %367 by %c3_i32_219 dim 1 : vector<8x256xf32>, i32 -> vector<8x256xf32>
    %cst_220 = arith.constant 0.000000e+00 : f32
    %381 = vector.broadcast %cst_220 : f32 to vector<8x256xf32>
    %382 = arith.select %31, %380, %381 : vector<8x256xi1>, vector<8x256xf32>
    %c2_i32_221 = arith.constant 2 : i32
    %383 = tpu.dynamic_rotate %367 by %c2_i32_221 dim 1 : vector<8x256xf32>, i32 -> vector<8x256xf32>
    %cst_222 = arith.constant 0.000000e+00 : f32
    %384 = vector.broadcast %cst_222 : f32 to vector<8x256xf32>
    %385 = arith.select %33, %383, %384 : vector<8x256xi1>, vector<8x256xf32>
    %c1_i32_223 = arith.constant 1 : i32
    %386 = tpu.dynamic_rotate %367 by %c1_i32_223 dim 1 : vector<8x256xf32>, i32 -> vector<8x256xf32>
    %cst_224 = arith.constant 0.000000e+00 : f32
    %387 = vector.broadcast %cst_224 : f32 to vector<8x256xf32>
    %388 = arith.select %35, %386, %387 : vector<8x256xi1>, vector<8x256xf32>
    %c255_i32_225 = arith.constant 255 : i32
    %389 = tpu.dynamic_rotate %367 by %c255_i32_225 dim 1 : vector<8x256xf32>, i32 -> vector<8x256xf32>
    %cst_226 = arith.constant 0.000000e+00 : f32
    %390 = vector.broadcast %cst_226 : f32 to vector<8x256xf32>
    %391 = arith.select %37, %389, %390 : vector<8x256xi1>, vector<8x256xf32>
    %c254_i32_227 = arith.constant 254 : i32
    %392 = tpu.dynamic_rotate %367 by %c254_i32_227 dim 1 : vector<8x256xf32>, i32 -> vector<8x256xf32>
    %cst_228 = arith.constant 0.000000e+00 : f32
    %393 = vector.broadcast %cst_228 : f32 to vector<8x256xf32>
    %394 = arith.select %39, %392, %393 : vector<8x256xi1>, vector<8x256xf32>
    %c253_i32_229 = arith.constant 253 : i32
    %395 = tpu.dynamic_rotate %367 by %c253_i32_229 dim 1 : vector<8x256xf32>, i32 -> vector<8x256xf32>
    %cst_230 = arith.constant 0.000000e+00 : f32
    %396 = vector.broadcast %cst_230 : f32 to vector<8x256xf32>
    %397 = arith.select %41, %395, %396 : vector<8x256xi1>, vector<8x256xf32>
    %c252_i32_231 = arith.constant 252 : i32
    %398 = tpu.dynamic_rotate %367 by %c252_i32_231 dim 1 : vector<8x256xf32>, i32 -> vector<8x256xf32>
    %cst_232 = arith.constant 0.000000e+00 : f32
    %399 = vector.broadcast %cst_232 : f32 to vector<8x256xf32>
    %400 = arith.select %43, %398, %399 : vector<8x256xi1>, vector<8x256xf32>
    %c251_i32_233 = arith.constant 251 : i32
    %401 = tpu.dynamic_rotate %367 by %c251_i32_233 dim 1 : vector<8x256xf32>, i32 -> vector<8x256xf32>
    %cst_234 = arith.constant 0.000000e+00 : f32
    %402 = vector.broadcast %cst_234 : f32 to vector<8x256xf32>
    %403 = arith.select %45, %401, %402 : vector<8x256xi1>, vector<8x256xf32>
    %c250_i32_235 = arith.constant 250 : i32
    %404 = tpu.dynamic_rotate %367 by %c250_i32_235 dim 1 : vector<8x256xf32>, i32 -> vector<8x256xf32>
    %cst_236 = arith.constant 0.000000e+00 : f32
    %405 = vector.broadcast %cst_236 : f32 to vector<8x256xf32>
    %406 = arith.select %47, %404, %405 : vector<8x256xi1>, vector<8x256xf32>
    %c249_i32_237 = arith.constant 249 : i32
    %407 = tpu.dynamic_rotate %367 by %c249_i32_237 dim 1 : vector<8x256xf32>, i32 -> vector<8x256xf32>
    %cst_238 = arith.constant 0.000000e+00 : f32
    %408 = vector.broadcast %cst_238 : f32 to vector<8x256xf32>
    %409 = arith.select %49, %407, %408 : vector<8x256xi1>, vector<8x256xf32>
    %410 = tpu.concatenate %370, %373, %376, %379, %382, %385, %388, %367, %391, %394, %397, %400, %403, %406, %409 in 0 : vector<8x256xf32>, vector<8x256xf32>, vector<8x256xf32>, vector<8x256xf32>, vector<8x256xf32>, vector<8x256xf32>, vector<8x256xf32>, vector<8x256xf32>, vector<8x256xf32>, vector<8x256xf32>, vector<8x256xf32>, vector<8x256xf32>, vector<8x256xf32>, vector<8x256xf32>, vector<8x256xf32> -> vector<120x256xf32>
    %c5 = arith.constant 5 : index
    %c0_239 = arith.constant 0 : index
    %c0_240 = arith.constant 0 : index
    %411 = vector.load %arg3[%c5, %c0_239, %c0_240] : memref<6x8x120xf32, #tpu.memory_space<vmem>>, vector<1x8x120xf32>
    %412 = vector.shape_cast %411 : vector<1x8x120xf32> to vector<8x120xf32>
    %cst_241 = arith.constant dense<0.000000e+00> : vector<8x256xf32>
    %413 = tpu.matmul %412, %410, %cst_241 {dimension_numbers = #tpu.dot_dimension_numbers<[1], [0], [0], [1], [0, 0, 1, 1], [], []>} : vector<8x120xf32>, vector<120x256xf32>, vector<8x256xf32> -> vector<8x256xf32>
    %c5_242 = arith.constant 5 : index
    %c0_243 = arith.constant 0 : index
    %c0_244 = arith.constant 0 : index
    %414 = vector.load %arg5[%c5_242, %c0_243, %c0_244] : memref<6x8x1xf32, #tpu.memory_space<vmem>>, vector<1x8x1xf32>
    %415 = vector.shape_cast %414 : vector<1x8x1xf32> to vector<8x1xf32>
    %416 = vector.broadcast %415 : vector<8x1xf32> to vector<8x256xf32>
    %417 = arith.addf %413, %416 : vector<8x256xf32>
    %418 = arith.subf %257, %417 : vector<8x256xf32>
    %cst_245 = arith.constant 0.000000e+00 : f32
    %419 = vector.broadcast %cst_245 : f32 to vector<8x256xf32>
    %420 = arith.subf %419, %418 : vector<8x256xf32>
    %421 = math.exp %420 : vector<8x256xf32>
    %cst_246 = arith.constant 1.000000e+00 : f32
    %422 = vector.broadcast %cst_246 : f32 to vector<8x256xf32>
    %423 = arith.addf %422, %421 : vector<8x256xf32>
    %cst_247 = arith.constant 1.000000e+00 : f32
    %424 = vector.broadcast %cst_247 : f32 to vector<8x256xf32>
    %425 = arith.divf %424, %423 : vector<8x256xf32>
    %cst_248 = arith.constant 1.000000e+00 : f32
    %426 = vector.broadcast %cst_248 : f32 to vector<8x256xf32>
    %427 = arith.subf %426, %425 : vector<8x256xf32>
    %428 = vector.extract_strided_slice %4 {offsets = [0, 0], sizes = [8, 128], strides = [1, 1]} : vector<8x256xf32> to vector<8x128xf32>
    %429 = vector.extract_strided_slice %425 {offsets = [0, 0], sizes = [8, 128], strides = [1, 1]} : vector<8x256xf32> to vector<8x128xf32>
    %430 = arith.mulf %428, %429 : vector<8x128xf32>
    %c0_249 = arith.constant 0 : index
    %c0_250 = arith.constant 0 : index
    %c0_251 = arith.constant 0 : index
    %431 = vector.load %arg6[%c0_249, %c0_250, %c0_251] : memref<2x8x128xf32, #tpu.memory_space<vmem>>, vector<1x8x128xf32>
    %432 = vector.shape_cast %431 : vector<1x8x128xf32> to vector<8x128xf32>
    %433 = vector.shape_cast %430 : vector<8x128xf32> to vector<1x8x128xf32>
    tpu.vector_store %arg6[%c0_249, %c0_250, %c0_251], %433 {strides = array<i32>} : memref<2x8x128xf32, #tpu.memory_space<vmem>>, vector<1x8x128xf32>,
    %434 = vector.extract_strided_slice %427 {offsets = [0, 0], sizes = [8, 128], strides = [1, 1]} : vector<8x256xf32> to vector<8x128xf32>
    %435 = arith.mulf %428, %434 : vector<8x128xf32>
    %c0_252 = arith.constant 0 : index
    %c0_253 = arith.constant 0 : index
    %c0_254 = arith.constant 0 : index
    %436 = vector.load %arg7[%c0_252, %c0_253, %c0_254] : memref<2x8x128xf32, #tpu.memory_space<vmem>>, vector<1x8x128xf32>
    %437 = vector.shape_cast %436 : vector<1x8x128xf32> to vector<8x128xf32>
    %438 = vector.shape_cast %435 : vector<8x128xf32> to vector<1x8x128xf32>
    tpu.vector_store %arg7[%c0_252, %c0_253, %c0_254], %438 {strides = array<i32>} : memref<2x8x128xf32, #tpu.memory_space<vmem>>, vector<1x8x128xf32>,
    %439 = vector.extract_strided_slice %425 {offsets = [0, 0], sizes = [8, 128], strides = [1, 1]} : vector<8x256xf32> to vector<8x128xf32>
    %c0_255 = arith.constant 0 : index
    %c0_256 = arith.constant 0 : index
    %c0_257 = arith.constant 0 : index
    %440 = vector.load %arg8[%c0_255, %c0_256, %c0_257] : memref<2x8x128xf32, #tpu.memory_space<vmem>>, vector<1x8x128xf32>
    %441 = vector.shape_cast %440 : vector<1x8x128xf32> to vector<8x128xf32>
    %442 = vector.shape_cast %439 : vector<8x128xf32> to vector<1x8x128xf32>
    tpu.vector_store %arg8[%c0_255, %c0_256, %c0_257], %442 {strides = array<i32>} : memref<2x8x128xf32, #tpu.memory_space<vmem>>, vector<1x8x128xf32>,
    %443 = vector.extract_strided_slice %427 {offsets = [0, 0], sizes = [8, 128], strides = [1, 1]} : vector<8x256xf32> to vector<8x128xf32>
    %c0_258 = arith.constant 0 : index
    %c0_259 = arith.constant 0 : index
    %c0_260 = arith.constant 0 : index
    %444 = vector.load %arg9[%c0_258, %c0_259, %c0_260] : memref<2x8x128xf32, #tpu.memory_space<vmem>>, vector<1x8x128xf32>
    %445 = vector.shape_cast %444 : vector<1x8x128xf32> to vector<8x128xf32>
    %446 = vector.shape_cast %443 : vector<8x128xf32> to vector<1x8x128xf32>
    tpu.vector_store %arg9[%c0_258, %c0_259, %c0_260], %446 {strides = array<i32>} : memref<2x8x128xf32, #tpu.memory_space<vmem>>, vector<1x8x128xf32>,
    %447 = vector.extract_strided_slice %4 {offsets = [0, 128], sizes = [8, 128], strides = [1, 1]} : vector<8x256xf32> to vector<8x128xf32>
    %448 = vector.extract_strided_slice %425 {offsets = [0, 128], sizes = [8, 128], strides = [1, 1]} : vector<8x256xf32> to vector<8x128xf32>
    %449 = arith.mulf %447, %448 : vector<8x128xf32>
    %c1_261 = arith.constant 1 : index
    %c0_262 = arith.constant 0 : index
    %c0_263 = arith.constant 0 : index
    %450 = vector.load %arg6[%c1_261, %c0_262, %c0_263] : memref<2x8x128xf32, #tpu.memory_space<vmem>>, vector<1x8x128xf32>
    %451 = vector.shape_cast %450 : vector<1x8x128xf32> to vector<8x128xf32>
    %452 = vector.shape_cast %449 : vector<8x128xf32> to vector<1x8x128xf32>
    tpu.vector_store %arg6[%c1_261, %c0_262, %c0_263], %452 {strides = array<i32>} : memref<2x8x128xf32, #tpu.memory_space<vmem>>, vector<1x8x128xf32>,
    %453 = vector.extract_strided_slice %427 {offsets = [0, 128], sizes = [8, 128], strides = [1, 1]} : vector<8x256xf32> to vector<8x128xf32>
    %454 = arith.mulf %447, %453 : vector<8x128xf32>
    %c1_264 = arith.constant 1 : index
    %c0_265 = arith.constant 0 : index
    %c0_266 = arith.constant 0 : index
    %455 = vector.load %arg7[%c1_264, %c0_265, %c0_266] : memref<2x8x128xf32, #tpu.memory_space<vmem>>, vector<1x8x128xf32>
    %456 = vector.shape_cast %455 : vector<1x8x128xf32> to vector<8x128xf32>
    %457 = vector.shape_cast %454 : vector<8x128xf32> to vector<1x8x128xf32>
    tpu.vector_store %arg7[%c1_264, %c0_265, %c0_266], %457 {strides = array<i32>} : memref<2x8x128xf32, #tpu.memory_space<vmem>>, vector<1x8x128xf32>,
    %458 = vector.extract_strided_slice %425 {offsets = [0, 128], sizes = [8, 128], strides = [1, 1]} : vector<8x256xf32> to vector<8x128xf32>
    %c1_267 = arith.constant 1 : index
    %c0_268 = arith.constant 0 : index
    %c0_269 = arith.constant 0 : index
    %459 = vector.load %arg8[%c1_267, %c0_268, %c0_269] : memref<2x8x128xf32, #tpu.memory_space<vmem>>, vector<1x8x128xf32>
    %460 = vector.shape_cast %459 : vector<1x8x128xf32> to vector<8x128xf32>
    %461 = vector.shape_cast %458 : vector<8x128xf32> to vector<1x8x128xf32>
    tpu.vector_store %arg8[%c1_267, %c0_268, %c0_269], %461 {strides = array<i32>} : memref<2x8x128xf32, #tpu.memory_space<vmem>>, vector<1x8x128xf32>,
    %462 = vector.extract_strided_slice %427 {offsets = [0, 128], sizes = [8, 128], strides = [1, 1]} : vector<8x256xf32> to vector<8x128xf32>
    %c1_270 = arith.constant 1 : index
    %c0_271 = arith.constant 0 : index
    %c0_272 = arith.constant 0 : index
    %463 = vector.load %arg9[%c1_270, %c0_271, %c0_272] : memref<2x8x128xf32, #tpu.memory_space<vmem>>, vector<1x8x128xf32>
    %464 = vector.shape_cast %463 : vector<1x8x128xf32> to vector<8x128xf32>
    %465 = vector.shape_cast %462 : vector<8x128xf32> to vector<1x8x128xf32>
    tpu.vector_store %arg9[%c1_270, %c0_271, %c0_272], %465 {strides = array<i32>} : memref<2x8x128xf32, #tpu.memory_space<vmem>>, vector<1x8x128xf32>,
    return
  }
  func.func @transform_0(%arg0: i32) -> (i32, i32, i32) {
    %c0_i32 = arith.constant 0 : i32
    %c0_i32_0 = arith.constant 0 : i32
    %c0_i32_1 = arith.constant 0 : i32
    return %arg0, %c0_i32, %c0_i32_0 : i32, i32, i32
  }
  func.func @transform_1(%arg0: i32) -> (i32, i32) {
    %c0_i32 = arith.constant 0 : i32
    %c0_i32_0 = arith.constant 0 : i32
    %c0_i32_1 = arith.constant 0 : i32
    return %c0_i32, %c0_i32_0 : i32, i32
  }
  func.func @transform_2(%arg0: i32) -> (i32, i32, i32) {
    %c0_i32 = arith.constant 0 : i32
    %c0_i32_0 = arith.constant 0 : i32
    %c0_i32_1 = arith.constant 0 : i32
    %c0_i32_2 = arith.constant 0 : i32
    return %c0_i32, %c0_i32_0, %c0_i32_1 : i32, i32, i32
  }
  func.func @transform_3(%arg0: i32) -> (i32, i32) {
    %c0_i32 = arith.constant 0 : i32
    %c0_i32_0 = arith.constant 0 : i32
    %c0_i32_1 = arith.constant 0 : i32
    return %c0_i32, %c0_i32_0 : i32, i32
  }
  func.func @transform_4(%arg0: i32) -> (i32, i32, i32) {
    %c0_i32 = arith.constant 0 : i32
    %c0_i32_0 = arith.constant 0 : i32
    %c0_i32_1 = arith.constant 0 : i32
    %c0_i32_2 = arith.constant 0 : i32
    return %c0_i32, %c0_i32_0, %c0_i32_1 : i32, i32, i32
  }
  func.func @transform_5(%arg0: i32) -> (i32, i32, i32) {
    %c0_i32 = arith.constant 0 : i32
    %c0_i32_0 = arith.constant 0 : i32
    %c0_i32_1 = arith.constant 0 : i32
    return %arg0, %c0_i32, %c0_i32_0 : i32, i32, i32
  }
  func.func @transform_6(%arg0: i32) -> (i32, i32, i32) {
    %c0_i32 = arith.constant 0 : i32
    %c0_i32_0 = arith.constant 0 : i32
    %c0_i32_1 = arith.constant 0 : i32
    return %arg0, %c0_i32, %c0_i32_0 : i32, i32, i32
  }
  func.func @transform_7(%arg0: i32) -> (i32, i32, i32) {
    %c0_i32 = arith.constant 0 : i32
    %c0_i32_0 = arith.constant 0 : i32
    %c0_i32_1 = arith.constant 0 : i32
    return %arg0, %c0_i32, %c0_i32_0 : i32, i32, i32
  }
  func.func @transform_8(%arg0: i32) -> (i32, i32, i32) {
    %c0_i32 = arith.constant 0 : i32
    %c0_i32_0 = arith.constant 0 : i32
    %c0_i32_1 = arith.constant 0 : i32
    return %arg0, %c0_i32, %c0_i32_0 : i32, i32, i32
  }
}

</mosaic_0001>

<llo_original>
// kernel: attention_block_sparse.1
$region0: #{attention_block_sparse.1}
  #allocation0 [shape = 'u32[]', space=smem, size = 0x4, offset = 0x4, fixed_abs, tag = 'smem constant byte address 0x4 - core index']
  #allocation1 [shape = 'u32[72,128]{1,0:T(1,128)}', space=vmem, size = 0x9000, scoped, tag = 'internal scratch']
  %s0 = inlined_call_operand.vmem [shape: f32[2,8,128], index: 0, kind: input, shape index: {}]
  %s1 = inlined_call_operand.hbm [shape: f32[16,120], index: 1, kind: input, shape index: {}]
  %s2 = inlined_call_operand.vmem [shape: f32[6,8,120], index: 2, kind: input, shape index: {}]
  %s3 = inlined_call_operand.vmem [shape: f32[16,1], index: 3, kind: input, shape index: {}]
  %s4 = inlined_call_operand.vmem [shape: f32[6,8,1], index: 4, kind: input, shape index: {}]
  %s5 = inlined_call_operand.hbm [shape: f32[2,8,128], index: 5, kind: output, shape index: {0}]
  %s6 = inlined_call_operand.hbm [shape: f32[2,8,128], index: 6, kind: output, shape index: {1}]
  %s7 = inlined_call_operand.hbm [shape: f32[2,8,128], index: 7, kind: output, shape index: {2}]
  %s8 = inlined_call_operand.hbm [shape: f32[2,8,128], index: 8, kind: output, shape index: {3}]
  %9 = xla_tuple %s5, %s6, %s7, %s8
  %s10 = sld [smem:[#allocation0]]
  $region58: #{attention_block_sparse.1} parent=0
    _
  %s12 = ssub.s32 1, %s10
  %s13 = scalar_select 0, %s12, %s10
  $region1: #{attention_block_sparse.1} parent=0
    #allocation2 [shape = 'u8[8192]{0}', space=vmem, size = 0x2000, scoped, tag = 'input window, operand 1, single buffered']
    #allocation3 [shape = 's32[1]{0}', space=sflag, size = 0x4, scoped, tag = 'scoped memory for attention_block_sparse.1']
    #allocation4 [shape = 's32[1]{0}', space=sflag, size = 0x4, scoped, tag = 'scoped memory for attention_block_sparse.1']
    #allocation5 [shape = 'u8[8192]{0}', space=vmem, size = 0x2000, scoped, tag = 'output window, operand 0, single buffered']
    #allocation6 [shape = 'u8[8192]{0}', space=vmem, size = 0x2000, scoped, tag = 'output window, operand 1, single buffered']
    #allocation7 [shape = 's32[1]{0}', space=sflag, size = 0x4, scoped, tag = 'scoped memory for attention_block_sparse.1']
    #allocation8 [shape = 'u8[8192]{0}', space=vmem, size = 0x2000, scoped, tag = 'output window, operand 2, single buffered']
    #allocation9 [shape = 'u8[8192]{0}', space=vmem, size = 0x2000, scoped, tag = 'output window, operand 3, single buffered']
    #allocation10 [shape = 's32[1]{0}', space=sflag, size = 0x4, scoped, tag = 'scoped memory for attention_block_sparse.1']
    %14 = vsyncpa [#allocation3], 0
    %15 = vsyncpa [#allocation4], 0
    %16 = vsyncpa [#allocation7], 0
    %17 = vsyncpa [#allocation10], 0
    // Predicated region
    $region2: #{attention_block_sparse.1} parent=1 // pred_check
      _
    $region3: #{attention_block_sparse.1} parent=1 // pred_check_branch
      %19 = sbr.rel (0) target = $region5
    $region4: #{attention_block_sparse.1} parent=1 // pred_region
      _
    $region5: #{attention_block_sparse.1} parent=1 // pred_fallthru
      _
    // Predicated region
    $region6: #{attention_block_sparse.1} parent=1 // pred_check
      _
    $region7: #{attention_block_sparse.1} parent=1 // pred_check_branch
      %21 = sbr.rel (0) target = $region9
    $region8: #{attention_block_sparse.1} parent=1 // pred_region
      %23 = vsyncadd [#allocation3], 0
      %s24 = sshll.u32 %s1, 4
      %s25 = int_to_ptr.hbm [resolvable:$true] %s24
      %s26 = sshll.u32 [#allocation2], 4
      %s27 = int_to_ptr.vmem [resolvable:$true] %s26
      %32 = dma.hbm_to_vmem [thread:$0]  %s25, 256, %s27, [#allocation3], 128, 128, 8
    $region9: #{attention_block_sparse.1} parent=1 // pred_fallthru
      _
    // Predicated region
    $region10: #{attention_block_sparse.1} parent=1 // pred_check
      _
    $region11: #{attention_block_sparse.1} parent=1 // pred_check_branch
      %34 = sbr.rel (0) target = $region13
    $region12: #{attention_block_sparse.1} parent=1 // pred_region
      _
    $region13: #{attention_block_sparse.1} parent=1 // pred_fallthru
      _
    // Predicated region
    $region14: #{attention_block_sparse.1} parent=1 // pred_check
      _
    $region15: #{attention_block_sparse.1} parent=1 // pred_check_branch
      %36 = sbr.rel (0) target = $region17
    $region16: #{attention_block_sparse.1} parent=1 // pred_region
      _
    $region17: #{attention_block_sparse.1} parent=1 // pred_fallthru
      _
    // Predicated region
    $region18: #{attention_block_sparse.1} parent=1 // pred_check
      _
    $region19: #{attention_block_sparse.1} parent=1 // pred_check_branch
      %38 = sbr.rel (0) target = $region21
    $region20: #{attention_block_sparse.1} parent=1 // pred_region
      _
    $region21: #{attention_block_sparse.1} parent=1 // pred_fallthru
      _
    // Predicated region
    $region22: #{attention_block_sparse.1} parent=1 // pred_check
      _
    $region23: #{attention_block_sparse.1} parent=1 // pred_check_branch
      %40 = sbr.rel (0) target = $region25
    $region24: #{attention_block_sparse.1} parent=1 // pred_region
      %42 = dma.done [#allocation3], 256
    $region25: #{attention_block_sparse.1} parent=1 // pred_fallthru
      _
    %v43 = vld [vmem:[%s0] sm:$0xff]
    %s44 = scalar_lea.vmem %s0, 8
    %v45 = vld [vmem:[%s44] sm:$0xff]
    %v46 = vlaneseq
    %v47 = vand.u32 %v46, 127
    %v48 = vadd.s32 %v47, 128
    %vm49 = vcmp.lt.s32.totalorder %v47, 0
    %v50 = vsub.s32 0, %v47
    %v51 = vsel %vm49, %v50, %v47
    %v52 = vshrl.u32 %v51, 7
    %v53 = vand.u32 %v51, 127
    %v54 = vsub.s32 0, %v53
    %v55 = vsel %vm49, %v54, %v53
    %vm56 = vcmp.lt.s32.totalorder %v48, 0
    %v57 = vsub.s32 0, %v48
    %v58 = vsel %vm56, %v57, %v48
    %v59 = vshrl.u32 %v58, 7
    %v60 = vand.u32 %v58, 127
    %v61 = vsub.s32 0, %v60
    %v62 = vsel %vm56, %v61, %v60
    %vm63 = vcmp.ne.s32.totalorder %v55, 0
    %vm64 = vcmp.ne.s32.totalorder %v62, 0
    %vm65 = vcmp.lt.s32.totalorder %v55, 0
    %vm66 = vcmp.lt.s32.totalorder %v62, 0
    %vm67 = vmand %vm65, %vm63
    %vm68 = vmand %vm66, %vm64
    %v69 = vadd.s32 %v55, 128
    %v70 = vadd.s32 %v62, 128
    %v71 = vsel %vm67, %v69, %v55
    %v72 = vsel %vm68, %v70, %v62
    %vm73 = vcmp.ge.s32.totalorder %v71, 7
    %vm74 = vcmp.ge.s32.totalorder %v72, 7
    %vm75 = vcmp.ge.s32.totalorder %v71, 6
    %vm76 = vcmp.ge.s32.totalorder %v72, 6
    %vm77 = vcmp.ge.s32.totalorder %v71, 5
    %vm78 = vcmp.ge.s32.totalorder %v72, 5
    %vm79 = vcmp.ge.s32.totalorder %v71, 4
    %vm80 = vcmp.ge.s32.totalorder %v72, 4
    %vm81 = vcmp.ge.s32.totalorder %v71, 3
    %vm82 = vcmp.ge.s32.totalorder %v72, 3
    %vm83 = vcmp.ge.s32.totalorder %v71, 2
    %vm84 = vcmp.ge.s32.totalorder %v72, 2
    %vm85 = vcmp.ge.s32.totalorder %v71, 1
    %vm86 = vcmp.ge.s32.totalorder %v72, 1
    %vm87 = vcmp.lt.s32.totalorder %v71, 127
    %vm88 = vcmp.lt.s32.totalorder %v72, 127
    %vm89 = vcmp.lt.s32.totalorder %v71, 126
    %vm90 = vcmp.lt.s32.totalorder %v72, 126
    %vm91 = vcmp.lt.s32.totalorder %v71, 125
    %vm92 = vcmp.lt.s32.totalorder %v72, 125
    %vm93 = vcmp.lt.s32.totalorder %v71, 124
    %vm94 = vcmp.lt.s32.totalorder %v72, 124
    %vm95 = vcmp.lt.s32.totalorder %v71, 123
    %vm96 = vcmp.lt.s32.totalorder %v72, 123
    %vm97 = vcmp.lt.s32.totalorder %v71, 122
    %vm98 = vcmp.lt.s32.totalorder %v72, 122
    %vm99 = vcmp.lt.s32.totalorder %v71, 121
    %vm100 = vcmp.lt.s32.totalorder %v72, 121
    %101 = vrot.lane.b32.xlu0 %v43, 7
    %v102 = vpop.permute.xlu0 %101
    %103 = vrot.lane.b32.xlu0 %v45, 7
    %v104 = vpop.permute.xlu0 %103
    %vm105 = vcmp.lt.s32.totalorder %v47, 7
    %v106 = vsel %vm105, %v102, %v104
    %v107 = vsel %vm105, %v104, %v102
    %v108 = vsel %vm73, %v107, 0.0
    %v109 = vsel %vm74, %v106, 0.0
    %110 = vrot.lane.b32.xlu0 %v43, 6
    %v111 = vpop.permute.xlu0 %110
    %112 = vrot.lane.b32.xlu0 %v45, 6
    %v113 = vpop.permute.xlu0 %112
    %vm114 = vcmp.lt.s32.totalorder %v47, 6
    %v115 = vsel %vm114, %v111, %v113
    %v116 = vsel %vm114, %v113, %v111
    %v117 = vsel %vm75, %v116, 0.0
    %v118 = vsel %vm76, %v115, 0.0
    %119 = vrot.lane.b32.xlu0 %v43, 5
    %v120 = vpop.permute.xlu0 %119
    %121 = vrot.lane.b32.xlu0 %v45, 5
    %v122 = vpop.permute.xlu0 %121
    %vm123 = vcmp.lt.s32.totalorder %v47, 5
    %v124 = vsel %vm123, %v120, %v122
    %v125 = vsel %vm123, %v122, %v120
    %v126 = vsel %vm77, %v125, 0.0
    %v127 = vsel %vm78, %v124, 0.0
    %128 = vrot.lane.b32.xlu0 %v43, 4
    %v129 = vpop.permute.xlu0 %128
    %130 = vrot.lane.b32.xlu0 %v45, 4
    %v131 = vpop.permute.xlu0 %130
    %vm132 = vcmp.lt.s32.totalorder %v47, 4
    %v133 = vsel %vm132, %v129, %v131
    %v134 = vsel %vm132, %v131, %v129
    %v135 = vsel %vm79, %v134, 0.0
    %v136 = vsel %vm80, %v133, 0.0
    %137 = vrot.lane.b32.xlu0 %v43, 3
    %v138 = vpop.permute.xlu0 %137
    %139 = vrot.lane.b32.xlu0 %v45, 3
    %v140 = vpop.permute.xlu0 %139
    %vm141 = vcmp.lt.s32.totalorder %v47, 3
    %v142 = vsel %vm141, %v138, %v140
    %v143 = vsel %vm141, %v140, %v138
    %v144 = vsel %vm81, %v143, 0.0
    %v145 = vsel %vm82, %v142, 0.0
    %146 = vrot.lane.b32.xlu0 %v43, 2
    %v147 = vpop.permute.xlu0 %146
    %148 = vrot.lane.b32.xlu0 %v45, 2
    %v149 = vpop.permute.xlu0 %148
    %vm150 = vcmp.lt.s32.totalorder %v47, 2
    %v151 = vsel %vm150, %v147, %v149
    %v152 = vsel %vm150, %v149, %v147
    %v153 = vsel %vm83, %v152, 0.0
    %v154 = vsel %vm84, %v151, 0.0
    %155 = vrot.lane.b32.xlu0 %v43, 1
    %v156 = vpop.permute.xlu0 %155
    %157 = vrot.lane.b32.xlu0 %v45, 1
    %v158 = vpop.permute.xlu0 %157
    %vm159 = vcmp.lt.s32.totalorder %v47, 1
    %v160 = vsel %vm159, %v156, %v158
    %v161 = vsel %vm159, %v158, %v156
    %v162 = vsel %vm85, %v161, 0.0
    %v163 = vsel %vm86, %v160, 0.0
    %164 = vrot.lane.b32.xlu0 %v43, 127
    %v165 = vpop.permute.xlu0 %164
    %166 = vrot.lane.b32.xlu0 %v45, 127
    %v167 = vpop.permute.xlu0 %166
    %vm168 = vcmp.lt.s32.totalorder %v47, 127
    %v169 = vsel %vm168, %v165, %v167
    %v170 = vsel %vm168, %v167, %v165
    %v171 = vsel %vm87, %v169, 0.0
    %v172 = vsel %vm88, %v170, 0.0
    %173 = vrot.lane.b32.xlu0 %v43, 126
    %v174 = vpop.permute.xlu0 %173
    %175 = vrot.lane.b32.xlu0 %v45, 126
    %v176 = vpop.permute.xlu0 %175
    %vm177 = vcmp.lt.s32.totalorder %v47, 126
    %v178 = vsel %vm177, %v174, %v176
    %v179 = vsel %vm177, %v176, %v174
    %v180 = vsel %vm89, %v178, 0.0
    %v181 = vsel %vm90, %v179, 0.0
    %182 = vrot.lane.b32.xlu0 %v43, 125
    %v183 = vpop.permute.xlu0 %182
    %184 = vrot.lane.b32.xlu0 %v45, 125
    %v185 = vpop.permute.xlu0 %184
    %vm186 = vcmp.lt.s32.totalorder %v47, 125
    %v187 = vsel %vm186, %v183, %v185
    %v188 = vsel %vm186, %v185, %v183
    %v189 = vsel %vm91, %v187, 0.0
    %v190 = vsel %vm92, %v188, 0.0
    %191 = vrot.lane.b32.xlu0 %v43, 124
    %v192 = vpop.permute.xlu0 %191
    %193 = vrot.lane.b32.xlu0 %v45, 124
    %v194 = vpop.permute.xlu0 %193
    %vm195 = vcmp.lt.s32.totalorder %v47, 124
    %v196 = vsel %vm195, %v192, %v194
    %v197 = vsel %vm195, %v194, %v192
    %v198 = vsel %vm93, %v196, 0.0
    %v199 = vsel %vm94, %v197, 0.0
    %200 = vrot.lane.b32.xlu0 %v43, 123
    %v201 = vpop.permute.xlu0 %200
    %202 = vrot.lane.b32.xlu0 %v45, 123
    %v203 = vpop.permute.xlu0 %202
    %vm204 = vcmp.lt.s32.totalorder %v47, 123
    %v205 = vsel %vm204, %v201, %v203
    %v206 = vsel %vm204, %v203, %v201
    %v207 = vsel %vm95, %v205, 0.0
    %v208 = vsel %vm96, %v206, 0.0
    %209 = vrot.lane.b32.xlu0 %v43, 122
    %v210 = vpop.permute.xlu0 %209
    %211 = vrot.lane.b32.xlu0 %v45, 122
    %v212 = vpop.permute.xlu0 %211
    %vm213 = vcmp.lt.s32.totalorder %v47, 122
    %v214 = vsel %vm213, %v210, %v212
    %v215 = vsel %vm213, %v212, %v210
    %v216 = vsel %vm97, %v214, 0.0
    %v217 = vsel %vm98, %v215, 0.0
    %218 = vrot.lane.b32.xlu0 %v43, 121
    %v219 = vpop.permute.xlu0 %218
    %220 = vrot.lane.b32.xlu0 %v45, 121
    %v221 = vpop.permute.xlu0 %220
    %vm222 = vcmp.lt.s32.totalorder %v47, 121
    %v223 = vsel %vm222, %v219, %v221
    %v224 = vsel %vm222, %v221, %v219
    %v225 = vsel %vm99, %v223, 0.0
    %v226 = vsel %vm100, %v224, 0.0
    %v227 = vld [vmem:[#allocation2] sm:$0xff]
    %v228 = vld [vmem:[#allocation2 + $0x8] sm:$0xff]
    %v229 = vld [vmem:[%s3] sm:$0xff]
    %v230 = vld [vmem:[%s3 + $0x8] sm:$0xff]
    %232 = vset.pattern.permute.xlu0 0
    %233 = vperm.xlu0 %232, %v229
    %v234 = vpop.permute.xlu0 %233
    %237 = vset.pattern.permute.xlu0 0
    %238 = vperm.xlu0 %237, %v230
    %v239 = vpop.permute.xlu0 %238
    %vm241 = vcmask 982016
    %v243 = vsel %vm241, %v227, 0
    %v246 = vsel %vm241, %v228, 0
    %248 = vmatpush.msra.mxu0 0.0
    %249 = vmatpush.msra.mxu0 %v225
    %250 = vmatpush.msra.mxu0 %v216
    %251 = vmatpush.msra.mxu0 %v207
    %252 = vmatpush.msra.mxu0 %v198
    %253 = vmatpush.msra.mxu0 %v189
    %254 = vmatpush.msra.mxu0 %v180
    %255 = vmatpush.msra.mxu0 %v171
    %256 = vmatpush.msra.mxu0 %v43
    %257 = vmatpush.msra.mxu0 %v162
    %258 = vmatpush.msra.mxu0 %v153
    %259 = vmatpush.msra.mxu0 %v144
    %260 = vmatpush.msra.mxu0 %v135
    %261 = vmatpush.msra.mxu0 %v126
    %262 = vmatpush.msra.mxu0 %v117
    %263 = vmatpush.msra.mxu0 %v108
    %264 = vmatmul.f32.gmra.mxu0 %v243
    %v265 = vpop.f32.mrf.mxu0
    %v266 = vadd.f32 %v234, %v265
    %267 = vmatmul.f32.gmra.mxu0 %v246
    %v268 = vpop.f32.mrf.mxu0
    %v269 = vadd.f32 %v239, %v268
    %270 = vdwg.mxu0
    %271 = vmatpush.msra.mxu0 0.0
    %272 = vmatpush.msra.mxu0 %v226
    %273 = vmatpush.msra.mxu0 %v217
    %274 = vmatpush.msra.mxu0 %v208
    %275 = vmatpush.msra.mxu0 %v199
    %276 = vmatpush.msra.mxu0 %v190
    %277 = vmatpush.msra.mxu0 %v181
    %278 = vmatpush.msra.mxu0 %v172
    %279 = vmatpush.msra.mxu0 %v45
    %280 = vmatpush.msra.mxu0 %v163
    %281 = vmatpush.msra.mxu0 %v154
    %282 = vmatpush.msra.mxu0 %v145
    %283 = vmatpush.msra.mxu0 %v136
    %284 = vmatpush.msra.mxu0 %v127
    %285 = vmatpush.msra.mxu0 %v118
    %286 = vmatpush.msra.mxu0 %v109
    %287 = vmatmul.f32.gmra.mxu0 %v243
    %v288 = vpop.f32.mrf.mxu0
    %v289 = vadd.f32 %v234, %v288
    %290 = vmatmul.f32.gmra.mxu0 %v246
    %v291 = vpop.f32.mrf.mxu0
    %v292 = vadd.f32 %v239, %v291
    %293 = vdwg.mxu0
    %v294 = vmul.f32 %v266, 0.2
    %v295 = vmul.f32 %v289, 0.2
    %v296 = vmax.f32 %v266, %v294
    %v297 = vmax.f32 %v289, %v295
    %298 = vrot.lane.b32.xlu0 %v296, 7
    %v299 = vpop.permute.xlu0 %298
    %300 = vrot.lane.b32.xlu0 %v297, 7
    %v301 = vpop.permute.xlu0 %300
    %v302 = vsel %vm105, %v299, %v301
    %v303 = vsel %vm105, %v301, %v299
    %v304 = vsel %vm73, %v303, 0.0
    %v305 = vsel %vm74, %v302, 0.0
    %306 = vrot.lane.b32.xlu0 %v296, 6
    %v307 = vpop.permute.xlu0 %306
    %308 = vrot.lane.b32.xlu0 %v297, 6
    %v309 = vpop.permute.xlu0 %308
    %v310 = vsel %vm114, %v307, %v309
    %v311 = vsel %vm114, %v309, %v307
    %v312 = vsel %vm75, %v311, 0.0
    %v313 = vsel %vm76, %v310, 0.0
    %314 = vrot.lane.b32.xlu0 %v296, 5
    %v315 = vpop.permute.xlu0 %314
    %316 = vrot.lane.b32.xlu0 %v297, 5
    %v317 = vpop.permute.xlu0 %316
    %v318 = vsel %vm123, %v315, %v317
    %v319 = vsel %vm123, %v317, %v315
    %v320 = vsel %vm77, %v319, 0.0
    %v321 = vsel %vm78, %v318, 0.0
    %322 = vrot.lane.b32.xlu0 %v296, 4
    %v323 = vpop.permute.xlu0 %322
    %324 = vrot.lane.b32.xlu0 %v297, 4
    %v325 = vpop.permute.xlu0 %324
    %v326 = vsel %vm132, %v323, %v325
    %v327 = vsel %vm132, %v325, %v323
    %v328 = vsel %vm79, %v327, 0.0
    %v329 = vsel %vm80, %v326, 0.0
    %330 = vrot.lane.b32.xlu0 %v296, 3
    %v331 = vpop.permute.xlu0 %330
    %332 = vrot.lane.b32.xlu0 %v297, 3
    %v333 = vpop.permute.xlu0 %332
    %v334 = vsel %vm141, %v331, %v333
    %v335 = vsel %vm141, %v333, %v331
    %v336 = vsel %vm81, %v335, 0.0
    %v337 = vsel %vm82, %v334, 0.0
    %338 = vrot.lane.b32.xlu0 %v296, 2
    %v339 = vpop.permute.xlu0 %338
    %340 = vrot.lane.b32.xlu0 %v297, 2
    %v341 = vpop.permute.xlu0 %340
    %v342 = vsel %vm150, %v339, %v341
    %v343 = vsel %vm150, %v341, %v339
    %v344 = vsel %vm83, %v343, 0.0
    %v345 = vsel %vm84, %v342, 0.0
    %346 = vrot.lane.b32.xlu0 %v296, 1
    %v347 = vpop.permute.xlu0 %346
    %348 = vrot.lane.b32.xlu0 %v297, 1
    %v349 = vpop.permute.xlu0 %348
    %v350 = vsel %vm159, %v347, %v349
    %v351 = vsel %vm159, %v349, %v347
    %v352 = vsel %vm85, %v351, 0.0
    %v353 = vsel %vm86, %v350, 0.0
    %354 = vrot.lane.b32.xlu0 %v296, 127
    %v355 = vpop.permute.xlu0 %354
    %356 = vrot.lane.b32.xlu0 %v297, 127
    %v357 = vpop.permute.xlu0 %356
    %v358 = vsel %vm168, %v355, %v357
    %v359 = vsel %vm168, %v357, %v355
    %v360 = vsel %vm87, %v358, 0.0
    %v361 = vsel %vm88, %v359, 0.0
    %362 = vrot.lane.b32.xlu0 %v296, 126
    %v363 = vpop.permute.xlu0 %362
    %364 = vrot.lane.b32.xlu0 %v297, 126
    %v365 = vpop.permute.xlu0 %364
    %v366 = vsel %vm177, %v363, %v365
    %v367 = vsel %vm177, %v365, %v363
    %v368 = vsel %vm89, %v366, 0.0
    %v369 = vsel %vm90, %v367, 0.0
    %370 = vrot.lane.b32.xlu0 %v296, 125
    %v371 = vpop.permute.xlu0 %370
    %372 = vrot.lane.b32.xlu0 %v297, 125
    %v373 = vpop.permute.xlu0 %372
    %v374 = vsel %vm186, %v371, %v373
    %v375 = vsel %vm186, %v373, %v371
    %v376 = vsel %vm91, %v374, 0.0
    %v377 = vsel %vm92, %v375, 0.0
    %378 = vrot.lane.b32.xlu0 %v296, 124
    %v379 = vpop.permute.xlu0 %378
    %380 = vrot.lane.b32.xlu0 %v297, 124
    %v381 = vpop.permute.xlu0 %380
    %v382 = vsel %vm195, %v379, %v381
    %v383 = vsel %vm195, %v381, %v379
    %v384 = vsel %vm93, %v382, 0.0
    %v385 = vsel %vm94, %v383, 0.0
    %386 = vrot.lane.b32.xlu0 %v296, 123
    %v387 = vpop.permute.xlu0 %386
    %388 = vrot.lane.b32.xlu0 %v297, 123
    %v389 = vpop.permute.xlu0 %388
    %v390 = vsel %vm204, %v387, %v389
    %v391 = vsel %vm204, %v389, %v387
    %v392 = vsel %vm95, %v390, 0.0
    %v393 = vsel %vm96, %v391, 0.0
    %394 = vrot.lane.b32.xlu0 %v296, 122
    %v395 = vpop.permute.xlu0 %394
    %396 = vrot.lane.b32.xlu0 %v297, 122
    %v397 = vpop.permute.xlu0 %396
    %v398 = vsel %vm213, %v395, %v397
    %v399 = vsel %vm213, %v397, %v395
    %v400 = vsel %vm97, %v398, 0.0
    %v401 = vsel %vm98, %v399, 0.0
    %402 = vrot.lane.b32.xlu0 %v296, 121
    %v403 = vpop.permute.xlu0 %402
    %404 = vrot.lane.b32.xlu0 %v297, 121
    %v405 = vpop.permute.xlu0 %404
    %v406 = vsel %vm222, %v403, %v405
    %v407 = vsel %vm222, %v405, %v403
    %v408 = vsel %vm99, %v406, 0.0
    %v409 = vsel %vm100, %v407, 0.0
    %v410 = vld [vmem:[%s2] sm:$0xff]
    %v411 = vld [vmem:[%s4] sm:$0xff]
    %413 = vset.pattern.permute.xlu0 0
    %414 = vperm.xlu0 %413, %v411
    %v415 = vpop.permute.xlu0 %414
    %v418 = vsel %vm241, %v410, 0
    %420 = vmatpush.msra.mxu0 0.0
    %421 = vmatpush.msra.mxu0 %v408
    %422 = vmatpush.msra.mxu0 %v400
    %423 = vmatpush.msra.mxu0 %v392
    %424 = vmatpush.msra.mxu0 %v384
    %425 = vmatpush.msra.mxu0 %v376
    %426 = vmatpush.msra.mxu0 %v368
    %427 = vmatpush.msra.mxu0 %v360
    %428 = vmatpush.msra.mxu0 %v296
    %429 = vmatpush.msra.mxu0 %v352
    %430 = vmatpush.msra.mxu0 %v344
    %431 = vmatpush.msra.mxu0 %v336
    %432 = vmatpush.msra.mxu0 %v328
    %433 = vmatpush.msra.mxu0 %v320
    %434 = vmatpush.msra.mxu0 %v312
    %435 = vmatpush.msra.mxu0 %v304
    %436 = vmatmul.f32.gmra.mxu0 %v418
    %v437 = vpop.f32.mrf.mxu0
    %v438 = vadd.f32 %v415, %v437
    %439 = vdwg.mxu0
    %440 = vmatpush.msra.mxu0 0.0
    %441 = vmatpush.msra.mxu0 %v409
    %442 = vmatpush.msra.mxu0 %v401
    %443 = vmatpush.msra.mxu0 %v393
    %444 = vmatpush.msra.mxu0 %v385
    %445 = vmatpush.msra.mxu0 %v377
    %446 = vmatpush.msra.mxu0 %v369
    %447 = vmatpush.msra.mxu0 %v361
    %448 = vmatpush.msra.mxu0 %v297
    %449 = vmatpush.msra.mxu0 %v353
    %450 = vmatpush.msra.mxu0 %v345
    %451 = vmatpush.msra.mxu0 %v337
    %452 = vmatpush.msra.mxu0 %v329
    %453 = vmatpush.msra.mxu0 %v321
    %454 = vmatpush.msra.mxu0 %v313
    %455 = vmatpush.msra.mxu0 %v305
    %456 = vmatmul.f32.gmra.mxu0 %v418
    %v457 = vpop.f32.mrf.mxu0
    %v458 = vadd.f32 %v415, %v457
    %459 = vdwg.mxu0
    %v460 = vmul.f32 %v438, 0.2
    %v461 = vmul.f32 %v458, 0.2
    %v462 = vmax.f32 %v438, %v460
    %v463 = vmax.f32 %v458, %v461
    %464 = vrot.lane.b32.xlu0 %v462, 7
    %v465 = vpop.permute.xlu0 %464
    %466 = vrot.lane.b32.xlu0 %v463, 7
    %v467 = vpop.permute.xlu0 %466
    %v468 = vsel %vm105, %v465, %v467
    %v469 = vsel %vm105, %v467, %v465
    %v470 = vsel %vm73, %v469, 0.0
    %v471 = vsel %vm74, %v468, 0.0
    %472 = vrot.lane.b32.xlu0 %v462, 6
    %v473 = vpop.permute.xlu0 %472
    %474 = vrot.lane.b32.xlu0 %v463, 6
    %v475 = vpop.permute.xlu0 %474
    %v476 = vsel %vm114, %v473, %v475
    %v477 = vsel %vm114, %v475, %v473
    %v478 = vsel %vm75, %v477, 0.0
    %v479 = vsel %vm76, %v476, 0.0
    %480 = vrot.lane.b32.xlu0 %v462, 5
    %v481 = vpop.permute.xlu0 %480
    %482 = vrot.lane.b32.xlu0 %v463, 5
    %v483 = vpop.permute.xlu0 %482
    %v484 = vsel %vm123, %v481, %v483
    %v485 = vsel %vm123, %v483, %v481
    %v486 = vsel %vm77, %v485, 0.0
    %v487 = vsel %vm78, %v484, 0.0
    %488 = vrot.lane.b32.xlu0 %v462, 4
    %v489 = vpop.permute.xlu0 %488
    %490 = vrot.lane.b32.xlu0 %v463, 4
    %v491 = vpop.permute.xlu0 %490
    %v492 = vsel %vm132, %v489, %v491
    %v493 = vsel %vm132, %v491, %v489
    %v494 = vsel %vm79, %v493, 0.0
    %v495 = vsel %vm80, %v492, 0.0
    %496 = vrot.lane.b32.xlu0 %v462, 3
    %v497 = vpop.permute.xlu0 %496
    %498 = vrot.lane.b32.xlu0 %v463, 3
    %v499 = vpop.permute.xlu0 %498
    %v500 = vsel %vm141, %v497, %v499
    %v501 = vsel %vm141, %v499, %v497
    %v502 = vsel %vm81, %v501, 0.0
    %v503 = vsel %vm82, %v500, 0.0
    %504 = vrot.lane.b32.xlu0 %v462, 2
    %v505 = vpop.permute.xlu0 %504
    %506 = vrot.lane.b32.xlu0 %v463, 2
    %v507 = vpop.permute.xlu0 %506
    %v508 = vsel %vm150, %v505, %v507
    %v509 = vsel %vm150, %v507, %v505
    %v510 = vsel %vm83, %v509, 0.0
    %v511 = vsel %vm84, %v508, 0.0
    %512 = vrot.lane.b32.xlu0 %v462, 1
    %v513 = vpop.permute.xlu0 %512
    %514 = vrot.lane.b32.xlu0 %v463, 1
    %v515 = vpop.permute.xlu0 %514
    %v516 = vsel %vm159, %v513, %v515
    %v517 = vsel %vm159, %v515, %v513
    %v518 = vsel %vm85, %v517, 0.0
    %v519 = vsel %vm86, %v516, 0.0
    %520 = vrot.lane.b32.xlu0 %v462, 127
    %v521 = vpop.permute.xlu0 %520
    %522 = vrot.lane.b32.xlu0 %v463, 127
    %v523 = vpop.permute.xlu0 %522
    %v524 = vsel %vm168, %v521, %v523
    %v525 = vsel %vm168, %v523, %v521
    %v526 = vsel %vm87, %v524, 0.0
    %v527 = vsel %vm88, %v525, 0.0
    %528 = vrot.lane.b32.xlu0 %v462, 126
    %v529 = vpop.permute.xlu0 %528
    %530 = vrot.lane.b32.xlu0 %v463, 126
    %v531 = vpop.permute.xlu0 %530
    %v532 = vsel %vm177, %v529, %v531
    %v533 = vsel %vm177, %v531, %v529
    %v534 = vsel %vm89, %v532, 0.0
    %v535 = vsel %vm90, %v533, 0.0
    %536 = vrot.lane.b32.xlu0 %v462, 125
    %v537 = vpop.permute.xlu0 %536
    %538 = vrot.lane.b32.xlu0 %v463, 125
    %v539 = vpop.permute.xlu0 %538
    %v540 = vsel %vm186, %v537, %v539
    %v541 = vsel %vm186, %v539, %v537
    %v542 = vsel %vm91, %v540, 0.0
    %v543 = vsel %vm92, %v541, 0.0
    %544 = vrot.lane.b32.xlu0 %v462, 124
    %v545 = vpop.permute.xlu0 %544
    %546 = vrot.lane.b32.xlu0 %v463, 124
    %v547 = vpop.permute.xlu0 %546
    %v548 = vsel %vm195, %v545, %v547
    %v549 = vsel %vm195, %v547, %v545
    %v550 = vsel %vm93, %v548, 0.0
    %v551 = vsel %vm94, %v549, 0.0
    %552 = vrot.lane.b32.xlu0 %v462, 123
    %v553 = vpop.permute.xlu0 %552
    %554 = vrot.lane.b32.xlu0 %v463, 123
    %v555 = vpop.permute.xlu0 %554
    %v556 = vsel %vm204, %v553, %v555
    %v557 = vsel %vm204, %v555, %v553
    %v558 = vsel %vm95, %v556, 0.0
    %v559 = vsel %vm96, %v557, 0.0
    %560 = vrot.lane.b32.xlu0 %v462, 122
    %v561 = vpop.permute.xlu0 %560
    %562 = vrot.lane.b32.xlu0 %v463, 122
    %v563 = vpop.permute.xlu0 %562
    %v564 = vsel %vm213, %v561, %v563
    %v565 = vsel %vm213, %v563, %v561
    %v566 = vsel %vm97, %v564, 0.0
    %v567 = vsel %vm98, %v565, 0.0
    %568 = vrot.lane.b32.xlu0 %v462, 121
    %v569 = vpop.permute.xlu0 %568
    %570 = vrot.lane.b32.xlu0 %v463, 121
    %v571 = vpop.permute.xlu0 %570
    %v572 = vsel %vm222, %v569, %v571
    %v573 = vsel %vm222, %v571, %v569
    %v574 = vsel %vm99, %v572, 0.0
    %v575 = vsel %vm100, %v573, 0.0
    %s576 = scalar_lea.vmem %s2, 8
    %v577 = vld [vmem:[%s576] sm:$0xff]
    %s578 = scalar_lea.vmem %s4, 8
    %v579 = vld [vmem:[%s578] sm:$0xff]
    %581 = vset.pattern.permute.xlu0 0
    %582 = vperm.xlu0 %581, %v579
    %v583 = vpop.permute.xlu0 %582
    %v586 = vsel %vm241, %v577, 0
    %588 = vmatpush.msra.mxu0 0.0
    %589 = vmatpush.msra.mxu0 %v574
    %590 = vmatpush.msra.mxu0 %v566
    %591 = vmatpush.msra.mxu0 %v558
    %592 = vmatpush.msra.mxu0 %v550
    %593 = vmatpush.msra.mxu0 %v542
    %594 = vmatpush.msra.mxu0 %v534
    %595 = vmatpush.msra.mxu0 %v526
    %596 = vmatpush.msra.mxu0 %v462
    %597 = vmatpush.msra.mxu0 %v518
    %598 = vmatpush.msra.mxu0 %v510
    %599 = vmatpush.msra.mxu0 %v502
    %600 = vmatpush.msra.mxu0 %v494
    %601 = vmatpush.msra.mxu0 %v486
    %602 = vmatpush.msra.mxu0 %v478
    %603 = vmatpush.msra.mxu0 %v470
    %604 = vmatmul.f32.gmra.mxu0 %v586
    %v605 = vpop.f32.mrf.mxu0
    %v606 = vadd.f32 %v583, %v605
    %607 = vdwg.mxu0
    %608 = vmatpush.msra.mxu0 0.0
    %609 = vmatpush.msra.mxu0 %v575
    %610 = vmatpush.msra.mxu0 %v567
    %611 = vmatpush.msra.mxu0 %v559
    %612 = vmatpush.msra.mxu0 %v551
    %613 = vmatpush.msra.mxu0 %v543
    %614 = vmatpush.msra.mxu0 %v535
    %615 = vmatpush.msra.mxu0 %v527
    %616 = vmatpush.msra.mxu0 %v463
    %617 = vmatpush.msra.mxu0 %v519
    %618 = vmatpush.msra.mxu0 %v511
    %619 = vmatpush.msra.mxu0 %v503
    %620 = vmatpush.msra.mxu0 %v495
    %621 = vmatpush.msra.mxu0 %v487
    %622 = vmatpush.msra.mxu0 %v479
    %623 = vmatpush.msra.mxu0 %v471
    %624 = vmatmul.f32.gmra.mxu0 %v586
    %v625 = vpop.f32.mrf.mxu0
    %v626 = vadd.f32 %v583, %v625
    %627 = vdwg.mxu0
    %v628 = vmul.f32 %v606, 0.2
    %v629 = vmul.f32 %v626, 0.2
    %v630 = vmax.f32 %v606, %v628
    %v631 = vmax.f32 %v626, %v629
    %632 = vrot.lane.b32.xlu0 %v630, 7
    %v633 = vpop.permute.xlu0 %632
    %634 = vrot.lane.b32.xlu0 %v631, 7
    %v635 = vpop.permute.xlu0 %634
    %v636 = vsel %vm105, %v633, %v635
    %v637 = vsel %vm105, %v635, %v633
    %v638 = vsel %vm73, %v637, 0.0
    %v639 = vsel %vm74, %v636, 0.0
    %640 = vrot.lane.b32.xlu0 %v630, 6
    %v641 = vpop.permute.xlu0 %640
    %642 = vrot.lane.b32.xlu0 %v631, 6
    %v643 = vpop.permute.xlu0 %642
    %v644 = vsel %vm114, %v641, %v643
    %v645 = vsel %vm114, %v643, %v641
    %v646 = vsel %vm75, %v645, 0.0
    %v647 = vsel %vm76, %v644, 0.0
    %648 = vrot.lane.b32.xlu0 %v630, 5
    %v649 = vpop.permute.xlu0 %648
    %650 = vrot.lane.b32.xlu0 %v631, 5
    %v651 = vpop.permute.xlu0 %650
    %v652 = vsel %vm123, %v649, %v651
    %v653 = vsel %vm123, %v651, %v649
    %v654 = vsel %vm77, %v653, 0.0
    %v655 = vsel %vm78, %v652, 0.0
    %656 = vrot.lane.b32.xlu0 %v630, 4
    %v657 = vpop.permute.xlu0 %656
    %658 = vrot.lane.b32.xlu0 %v631, 4
    %v659 = vpop.permute.xlu0 %658
    %v660 = vsel %vm132, %v657, %v659
    %v661 = vsel %vm132, %v659, %v657
    %v662 = vsel %vm79, %v661, 0.0
    %v663 = vsel %vm80, %v660, 0.0
    %664 = vrot.lane.b32.xlu0 %v630, 3
    %v665 = vpop.permute.xlu0 %664
    %666 = vrot.lane.b32.xlu0 %v631, 3
    %v667 = vpop.permute.xlu0 %666
    %v668 = vsel %vm141, %v665, %v667
    %v669 = vsel %vm141, %v667, %v665
    %v670 = vsel %vm81, %v669, 0.0
    %v671 = vsel %vm82, %v668, 0.0
    %672 = vrot.lane.b32.xlu0 %v630, 2
    %v673 = vpop.permute.xlu0 %672
    %674 = vrot.lane.b32.xlu0 %v631, 2
    %v675 = vpop.permute.xlu0 %674
    %v676 = vsel %vm150, %v673, %v675
    %v677 = vsel %vm150, %v675, %v673
    %v678 = vsel %vm83, %v677, 0.0
    %v679 = vsel %vm84, %v676, 0.0
    %680 = vrot.lane.b32.xlu0 %v630, 1
    %v681 = vpop.permute.xlu0 %680
    %682 = vrot.lane.b32.xlu0 %v631, 1
    %v683 = vpop.permute.xlu0 %682
    %v684 = vsel %vm159, %v681, %v683
    %v685 = vsel %vm159, %v683, %v681
    %v686 = vsel %vm85, %v685, 0.0
    %v687 = vsel %vm86, %v684, 0.0
    %688 = vrot.lane.b32.xlu0 %v630, 127
    %v689 = vpop.permute.xlu0 %688
    %690 = vrot.lane.b32.xlu0 %v631, 127
    %v691 = vpop.permute.xlu0 %690
    %v692 = vsel %vm168, %v689, %v691
    %v693 = vsel %vm168, %v691, %v689
    %v694 = vsel %vm87, %v692, 0.0
    %v695 = vsel %vm88, %v693, 0.0
    %696 = vrot.lane.b32.xlu0 %v630, 126
    %v697 = vpop.permute.xlu0 %696
    %698 = vrot.lane.b32.xlu0 %v631, 126
    %v699 = vpop.permute.xlu0 %698
    %v700 = vsel %vm177, %v697, %v699
    %v701 = vsel %vm177, %v699, %v697
    %v702 = vsel %vm89, %v700, 0.0
    %v703 = vsel %vm90, %v701, 0.0
    %704 = vrot.lane.b32.xlu0 %v630, 125
    %v705 = vpop.permute.xlu0 %704
    %706 = vrot.lane.b32.xlu0 %v631, 125
    %v707 = vpop.permute.xlu0 %706
    %v708 = vsel %vm186, %v705, %v707
    %v709 = vsel %vm186, %v707, %v705
    %v710 = vsel %vm91, %v708, 0.0
    %v711 = vsel %vm92, %v709, 0.0
    %712 = vrot.lane.b32.xlu0 %v630, 124
    %v713 = vpop.permute.xlu0 %712
    %714 = vrot.lane.b32.xlu0 %v631, 124
    %v715 = vpop.permute.xlu0 %714
    %v716 = vsel %vm195, %v713, %v715
    %v717 = vsel %vm195, %v715, %v713
    %v718 = vsel %vm93, %v716, 0.0
    %v719 = vsel %vm94, %v717, 0.0
    %720 = vrot.lane.b32.xlu0 %v630, 123
    %v721 = vpop.permute.xlu0 %720
    %722 = vrot.lane.b32.xlu0 %v631, 123
    %v723 = vpop.permute.xlu0 %722
    %v724 = vsel %vm204, %v721, %v723
    %v725 = vsel %vm204, %v723, %v721
    %v726 = vsel %vm95, %v724, 0.0
    %v727 = vsel %vm96, %v725, 0.0
    %728 = vrot.lane.b32.xlu0 %v630, 122
    %v729 = vpop.permute.xlu0 %728
    %730 = vrot.lane.b32.xlu0 %v631, 122
    %v731 = vpop.permute.xlu0 %730
    %v732 = vsel %vm213, %v729, %v731
    %v733 = vsel %vm213, %v731, %v729
    %v734 = vsel %vm97, %v732, 0.0
    %v735 = vsel %vm98, %v733, 0.0
    %736 = vrot.lane.b32.xlu0 %v630, 121
    %v737 = vpop.permute.xlu0 %736
    %738 = vrot.lane.b32.xlu0 %v631, 121
    %v739 = vpop.permute.xlu0 %738
    %v740 = vsel %vm222, %v737, %v739
    %v741 = vsel %vm222, %v739, %v737
    %v742 = vsel %vm99, %v740, 0.0
    %v743 = vsel %vm100, %v741, 0.0
    %s744 = scalar_lea.vmem %s2, 16
    %v745 = vld [vmem:[%s744] sm:$0xff]
    %s746 = scalar_lea.vmem %s4, 16
    %v747 = vld [vmem:[%s746] sm:$0xff]
    %749 = vset.pattern.permute.xlu0 0
    %750 = vperm.xlu0 %749, %v747
    %v751 = vpop.permute.xlu0 %750
    %v754 = vsel %vm241, %v745, 0
    %756 = vmatpush.msra.mxu0 0.0
    %757 = vmatpush.msra.mxu0 %v742
    %758 = vmatpush.msra.mxu0 %v734
    %759 = vmatpush.msra.mxu0 %v726
    %760 = vmatpush.msra.mxu0 %v718
    %761 = vmatpush.msra.mxu0 %v710
    %762 = vmatpush.msra.mxu0 %v702
    %763 = vmatpush.msra.mxu0 %v694
    %764 = vmatpush.msra.mxu0 %v630
    %765 = vmatpush.msra.mxu0 %v686
    %766 = vmatpush.msra.mxu0 %v678
    %767 = vmatpush.msra.mxu0 %v670
    %768 = vmatpush.msra.mxu0 %v662
    %769 = vmatpush.msra.mxu0 %v654
    %770 = vmatpush.msra.mxu0 %v646
    %771 = vmatpush.msra.mxu0 %v638
    %772 = vmatmul.f32.gmra.mxu0 %v754
    %v773 = vpop.f32.mrf.mxu0
    %v774 = vadd.f32 %v751, %v773
    %775 = vdwg.mxu0
    %776 = vmatpush.msra.mxu0 0.0
    %777 = vmatpush.msra.mxu0 %v743
    %778 = vmatpush.msra.mxu0 %v735
    %779 = vmatpush.msra.mxu0 %v727
    %780 = vmatpush.msra.mxu0 %v719
    %781 = vmatpush.msra.mxu0 %v711
    %782 = vmatpush.msra.mxu0 %v703
    %783 = vmatpush.msra.mxu0 %v695
    %784 = vmatpush.msra.mxu0 %v631
    %785 = vmatpush.msra.mxu0 %v687
    %786 = vmatpush.msra.mxu0 %v679
    %787 = vmatpush.msra.mxu0 %v671
    %788 = vmatpush.msra.mxu0 %v663
    %789 = vmatpush.msra.mxu0 %v655
    %790 = vmatpush.msra.mxu0 %v647
    %791 = vmatpush.msra.mxu0 %v639
    %792 = vmatmul.f32.gmra.mxu0 %v754
    %v793 = vpop.f32.mrf.mxu0
    %v794 = vadd.f32 %v751, %v793
    %795 = vdwg.mxu0
    %v796 = vmul.f32 %v269, 0.2
    %v797 = vmul.f32 %v292, 0.2
    %v798 = vmax.f32 %v269, %v796
    %v799 = vmax.f32 %v292, %v797
    %800 = vrot.lane.b32.xlu0 %v798, 7
    %v801 = vpop.permute.xlu0 %800
    %802 = vrot.lane.b32.xlu0 %v799, 7
    %v803 = vpop.permute.xlu0 %802
    %v804 = vsel %vm105, %v801, %v803
    %v805 = vsel %vm105, %v803, %v801
    %v806 = vsel %vm73, %v805, 0.0
    %v807 = vsel %vm74, %v804, 0.0
    %808 = vrot.lane.b32.xlu0 %v798, 6
    %v809 = vpop.permute.xlu0 %808
    %810 = vrot.lane.b32.xlu0 %v799, 6
    %v811 = vpop.permute.xlu0 %810
    %v812 = vsel %vm114, %v809, %v811
    %v813 = vsel %vm114, %v811, %v809
    %v814 = vsel %vm75, %v813, 0.0
    %v815 = vsel %vm76, %v812, 0.0
    %816 = vrot.lane.b32.xlu0 %v798, 5
    %v817 = vpop.permute.xlu0 %816
    %818 = vrot.lane.b32.xlu0 %v799, 5
    %v819 = vpop.permute.xlu0 %818
    %v820 = vsel %vm123, %v817, %v819
    %v821 = vsel %vm123, %v819, %v817
    %v822 = vsel %vm77, %v821, 0.0
    %v823 = vsel %vm78, %v820, 0.0
    %824 = vrot.lane.b32.xlu0 %v798, 4
    %v825 = vpop.permute.xlu0 %824
    %826 = vrot.lane.b32.xlu0 %v799, 4
    %v827 = vpop.permute.xlu0 %826
    %v828 = vsel %vm132, %v825, %v827
    %v829 = vsel %vm132, %v827, %v825
    %v830 = vsel %vm79, %v829, 0.0
    %v831 = vsel %vm80, %v828, 0.0
    %832 = vrot.lane.b32.xlu0 %v798, 3
    %v833 = vpop.permute.xlu0 %832
    %834 = vrot.lane.b32.xlu0 %v799, 3
    %v835 = vpop.permute.xlu0 %834
    %v836 = vsel %vm141, %v833, %v835
    %v837 = vsel %vm141, %v835, %v833
    %v838 = vsel %vm81, %v837, 0.0
    %v839 = vsel %vm82, %v836, 0.0
    %840 = vrot.lane.b32.xlu0 %v798, 2
    %v841 = vpop.permute.xlu0 %840
    %842 = vrot.lane.b32.xlu0 %v799, 2
    %v843 = vpop.permute.xlu0 %842
    %v844 = vsel %vm150, %v841, %v843
    %v845 = vsel %vm150, %v843, %v841
    %v846 = vsel %vm83, %v845, 0.0
    %v847 = vsel %vm84, %v844, 0.0
    %848 = vrot.lane.b32.xlu0 %v798, 1
    %v849 = vpop.permute.xlu0 %848
    %850 = vrot.lane.b32.xlu0 %v799, 1
    %v851 = vpop.permute.xlu0 %850
    %v852 = vsel %vm159, %v849, %v851
    %v853 = vsel %vm159, %v851, %v849
    %v854 = vsel %vm85, %v853, 0.0
    %v855 = vsel %vm86, %v852, 0.0
    %856 = vrot.lane.b32.xlu0 %v798, 127
    %v857 = vpop.permute.xlu0 %856
    %858 = vrot.lane.b32.xlu0 %v799, 127
    %v859 = vpop.permute.xlu0 %858
    %v860 = vsel %vm168, %v857, %v859
    %v861 = vsel %vm168, %v859, %v857
    %v862 = vsel %vm87, %v860, 0.0
    %v863 = vsel %vm88, %v861, 0.0
    %864 = vrot.lane.b32.xlu0 %v798, 126
    %v865 = vpop.permute.xlu0 %864
    %866 = vrot.lane.b32.xlu0 %v799, 126
    %v867 = vpop.permute.xlu0 %866
    %v868 = vsel %vm177, %v865, %v867
    %v869 = vsel %vm177, %v867, %v865
    %v870 = vsel %vm89, %v868, 0.0
    %v871 = vsel %vm90, %v869, 0.0
    %872 = vrot.lane.b32.xlu0 %v798, 125
    %v873 = vpop.permute.xlu0 %872
    %874 = vrot.lane.b32.xlu0 %v799, 125
    %v875 = vpop.permute.xlu0 %874
    %v876 = vsel %vm186, %v873, %v875
    %v877 = vsel %vm186, %v875, %v873
    %v878 = vsel %vm91, %v876, 0.0
    %v879 = vsel %vm92, %v877, 0.0
    %880 = vrot.lane.b32.xlu0 %v798, 124
    %v881 = vpop.permute.xlu0 %880
    %882 = vrot.lane.b32.xlu0 %v799, 124
    %v883 = vpop.permute.xlu0 %882
    %v884 = vsel %vm195, %v881, %v883
    %v885 = vsel %vm195, %v883, %v881
    %v886 = vsel %vm93, %v884, 0.0
    %v887 = vsel %vm94, %v885, 0.0
    %888 = vrot.lane.b32.xlu0 %v798, 123
    %v889 = vpop.permute.xlu0 %888
    %890 = vrot.lane.b32.xlu0 %v799, 123
    %v891 = vpop.permute.xlu0 %890
    %v892 = vsel %vm204, %v889, %v891
    %v893 = vsel %vm204, %v891, %v889
    %v894 = vsel %vm95, %v892, 0.0
    %v895 = vsel %vm96, %v893, 0.0
    %896 = vrot.lane.b32.xlu0 %v798, 122
    %v897 = vpop.permute.xlu0 %896
    %898 = vrot.lane.b32.xlu0 %v799, 122
    %v899 = vpop.permute.xlu0 %898
    %v900 = vsel %vm213, %v897, %v899
    %v901 = vsel %vm213, %v899, %v897
    %v902 = vsel %vm97, %v900, 0.0
    %v903 = vsel %vm98, %v901, 0.0
    %904 = vrot.lane.b32.xlu0 %v798, 121
    %v905 = vpop.permute.xlu0 %904
    %906 = vrot.lane.b32.xlu0 %v799, 121
    %v907 = vpop.permute.xlu0 %906
    %v908 = vsel %vm222, %v905, %v907
    %v909 = vsel %vm222, %v907, %v905
    %v910 = vsel %vm99, %v908, 0.0
    %v911 = vsel %vm100, %v909, 0.0
    %s912 = scalar_lea.vmem %s2, 24
    %v913 = vld [vmem:[%s912] sm:$0xff]
    %s914 = scalar_lea.vmem %s4, 24
    %v915 = vld [vmem:[%s914] sm:$0xff]
    %917 = vset.pattern.permute.xlu0 0
    %918 = vperm.xlu0 %917, %v915
    %v919 = vpop.permute.xlu0 %918
    %v922 = vsel %vm241, %v913, 0
    %924 = vmatpush.msra.mxu0 0.0
    %925 = vmatpush.msra.mxu0 %v910
    %926 = vmatpush.msra.mxu0 %v902
    %927 = vmatpush.msra.mxu0 %v894
    %928 = vmatpush.msra.mxu0 %v886
    %929 = vmatpush.msra.mxu0 %v878
    %930 = vmatpush.msra.mxu0 %v870
    %931 = vmatpush.msra.mxu0 %v862
    %932 = vmatpush.msra.mxu0 %v798
    %933 = vmatpush.msra.mxu0 %v854
    %934 = vmatpush.msra.mxu0 %v846
    %935 = vmatpush.msra.mxu0 %v838
    %936 = vmatpush.msra.mxu0 %v830
    %937 = vmatpush.msra.mxu0 %v822
    %938 = vmatpush.msra.mxu0 %v814
    %939 = vmatpush.msra.mxu0 %v806
    %940 = vmatmul.f32.gmra.mxu0 %v922
    %v941 = vpop.f32.mrf.mxu0
    %v942 = vadd.f32 %v919, %v941
    %943 = vdwg.mxu0
    %944 = vmatpush.msra.mxu0 0.0
    %945 = vmatpush.msra.mxu0 %v911
    %946 = vmatpush.msra.mxu0 %v903
    %947 = vmatpush.msra.mxu0 %v895
    %948 = vmatpush.msra.mxu0 %v887
    %949 = vmatpush.msra.mxu0 %v879
    %950 = vmatpush.msra.mxu0 %v871
    %951 = vmatpush.msra.mxu0 %v863
    %952 = vmatpush.msra.mxu0 %v799
    %953 = vmatpush.msra.mxu0 %v855
    %954 = vmatpush.msra.mxu0 %v847
    %955 = vmatpush.msra.mxu0 %v839
    %956 = vmatpush.msra.mxu0 %v831
    %957 = vmatpush.msra.mxu0 %v823
    %958 = vmatpush.msra.mxu0 %v815
    %959 = vmatpush.msra.mxu0 %v807
    %960 = vmatmul.f32.gmra.mxu0 %v922
    %v961 = vpop.f32.mrf.mxu0
    %v962 = vadd.f32 %v919, %v961
    %963 = vdwg.mxu0
    %v964 = vmul.f32 %v942, 0.2
    %v965 = vmul.f32 %v962, 0.2
    %v966 = vmax.f32 %v942, %v964
    %v967 = vmax.f32 %v962, %v965
    %968 = vrot.lane.b32.xlu0 %v966, 7
    %v969 = vpop.permute.xlu0 %968
    %970 = vrot.lane.b32.xlu0 %v967, 7
    %v971 = vpop.permute.xlu0 %970
    %v972 = vsel %vm105, %v969, %v971
    %v973 = vsel %vm105, %v971, %v969
    %v974 = vsel %vm73, %v973, 0.0
    %v975 = vsel %vm74, %v972, 0.0
    %976 = vrot.lane.b32.xlu0 %v966, 6
    %v977 = vpop.permute.xlu0 %976
    %978 = vrot.lane.b32.xlu0 %v967, 6
    %v979 = vpop.permute.xlu0 %978
    %v980 = vsel %vm114, %v977, %v979
    %v981 = vsel %vm114, %v979, %v977
    %v982 = vsel %vm75, %v981, 0.0
    %v983 = vsel %vm76, %v980, 0.0
    %984 = vrot.lane.b32.xlu0 %v966, 5
    %v985 = vpop.permute.xlu0 %984
    %986 = vrot.lane.b32.xlu0 %v967, 5
    %v987 = vpop.permute.xlu0 %986
    %v988 = vsel %vm123, %v985, %v987
    %v989 = vsel %vm123, %v987, %v985
    %v990 = vsel %vm77, %v989, 0.0
    %v991 = vsel %vm78, %v988, 0.0
    %992 = vrot.lane.b32.xlu0 %v966, 4
    %v993 = vpop.permute.xlu0 %992
    %994 = vrot.lane.b32.xlu0 %v967, 4
    %v995 = vpop.permute.xlu0 %994
    %v996 = vsel %vm132, %v993, %v995
    %v997 = vsel %vm132, %v995, %v993
    %v998 = vsel %vm79, %v997, 0.0
    %v999 = vsel %vm80, %v996, 0.0
    %1000 = vrot.lane.b32.xlu0 %v966, 3
    %v1001 = vpop.permute.xlu0 %1000
    %1002 = vrot.lane.b32.xlu0 %v967, 3
    %v1003 = vpop.permute.xlu0 %1002
    %v1004 = vsel %vm141, %v1001, %v1003
    %v1005 = vsel %vm141, %v1003, %v1001
    %v1006 = vsel %vm81, %v1005, 0.0
    %v1007 = vsel %vm82, %v1004, 0.0
    %1008 = vrot.lane.b32.xlu0 %v966, 2
    %v1009 = vpop.permute.xlu0 %1008
    %1010 = vrot.lane.b32.xlu0 %v967, 2
    %v1011 = vpop.permute.xlu0 %1010
    %v1012 = vsel %vm150, %v1009, %v1011
    %v1013 = vsel %vm150, %v1011, %v1009
    %v1014 = vsel %vm83, %v1013, 0.0
    %v1015 = vsel %vm84, %v1012, 0.0
    %1016 = vrot.lane.b32.xlu0 %v966, 1
    %v1017 = vpop.permute.xlu0 %1016
    %1018 = vrot.lane.b32.xlu0 %v967, 1
    %v1019 = vpop.permute.xlu0 %1018
    %v1020 = vsel %vm159, %v1017, %v1019
    %v1021 = vsel %vm159, %v1019, %v1017
    %v1022 = vsel %vm85, %v1021, 0.0
    %v1023 = vsel %vm86, %v1020, 0.0
    %1024 = vrot.lane.b32.xlu0 %v966, 127
    %v1025 = vpop.permute.xlu0 %1024
    %1026 = vrot.lane.b32.xlu0 %v967, 127
    %v1027 = vpop.permute.xlu0 %1026
    %v1028 = vsel %vm168, %v1025, %v1027
    %v1029 = vsel %vm168, %v1027, %v1025
    %v1030 = vsel %vm87, %v1028, 0.0
    %v1031 = vsel %vm88, %v1029, 0.0
    %1032 = vrot.lane.b32.xlu0 %v966, 126
    %v1033 = vpop.permute.xlu0 %1032
    %1034 = vrot.lane.b32.xlu0 %v967, 126
    %v1035 = vpop.permute.xlu0 %1034
    %v1036 = vsel %vm177, %v1033, %v1035
    %v1037 = vsel %vm177, %v1035, %v1033
    %v1038 = vsel %vm89, %v1036, 0.0
    %v1039 = vsel %vm90, %v1037, 0.0
    %1040 = vrot.lane.b32.xlu0 %v966, 125
    %v1041 = vpop.permute.xlu0 %1040
    %1042 = vrot.lane.b32.xlu0 %v967, 125
    %v1043 = vpop.permute.xlu0 %1042
    %v1044 = vsel %vm186, %v1041, %v1043
    %v1045 = vsel %vm186, %v1043, %v1041
    %v1046 = vsel %vm91, %v1044, 0.0
    %v1047 = vsel %vm92, %v1045, 0.0
    %1048 = vrot.lane.b32.xlu0 %v966, 124
    %v1049 = vpop.permute.xlu0 %1048
    %1050 = vrot.lane.b32.xlu0 %v967, 124
    %v1051 = vpop.permute.xlu0 %1050
    %v1052 = vsel %vm195, %v1049, %v1051
    %v1053 = vsel %vm195, %v1051, %v1049
    %v1054 = vsel %vm93, %v1052, 0.0
    %v1055 = vsel %vm94, %v1053, 0.0
    %1056 = vrot.lane.b32.xlu0 %v966, 123
    %v1057 = vpop.permute.xlu0 %1056
    %1058 = vrot.lane.b32.xlu0 %v967, 123
    %v1059 = vpop.permute.xlu0 %1058
    %v1060 = vsel %vm204, %v1057, %v1059
    %v1061 = vsel %vm204, %v1059, %v1057
    %v1062 = vsel %vm95, %v1060, 0.0
    %v1063 = vsel %vm96, %v1061, 0.0
    %1064 = vrot.lane.b32.xlu0 %v966, 122
    %v1065 = vpop.permute.xlu0 %1064
    %1066 = vrot.lane.b32.xlu0 %v967, 122
    %v1067 = vpop.permute.xlu0 %1066
    %v1068 = vsel %vm213, %v1065, %v1067
    %v1069 = vsel %vm213, %v1067, %v1065
    %v1070 = vsel %vm97, %v1068, 0.0
    %v1071 = vsel %vm98, %v1069, 0.0
    %1072 = vrot.lane.b32.xlu0 %v966, 121
    %v1073 = vpop.permute.xlu0 %1072
    %1074 = vrot.lane.b32.xlu0 %v967, 121
    %v1075 = vpop.permute.xlu0 %1074
    %v1076 = vsel %vm222, %v1073, %v1075
    %v1077 = vsel %vm222, %v1075, %v1073
    %v1078 = vsel %vm99, %v1076, 0.0
    %v1079 = vsel %vm100, %v1077, 0.0
    %s1080 = scalar_lea.vmem %s2, 32
    %v1081 = vld [vmem:[%s1080] sm:$0xff]
    %s1082 = scalar_lea.vmem %s4, 32
    %v1083 = vld [vmem:[%s1082] sm:$0xff]
    %1085 = vset.pattern.permute.xlu0 0
    %1086 = vperm.xlu0 %1085, %v1083
    %v1087 = vpop.permute.xlu0 %1086
    %v1090 = vsel %vm241, %v1081, 0
    %1092 = vmatpush.msra.mxu0 0.0
    %1093 = vmatpush.msra.mxu0 %v1078
    %1094 = vmatpush.msra.mxu0 %v1070
    %1095 = vmatpush.msra.mxu0 %v1062
    %1096 = vmatpush.msra.mxu0 %v1054
    %1097 = vmatpush.msra.mxu0 %v1046
    %1098 = vmatpush.msra.mxu0 %v1038
    %1099 = vmatpush.msra.mxu0 %v1030
    %1100 = vmatpush.msra.mxu0 %v966
    %1101 = vmatpush.msra.mxu0 %v1022
    %1102 = vmatpush.msra.mxu0 %v1014
    %1103 = vmatpush.msra.mxu0 %v1006
    %1104 = vmatpush.msra.mxu0 %v998
    %1105 = vmatpush.msra.mxu0 %v990
    %1106 = vmatpush.msra.mxu0 %v982
    %1107 = vmatpush.msra.mxu0 %v974
    %1108 = vmatmul.f32.gmra.mxu0 %v1090
    %v1109 = vpop.f32.mrf.mxu0
    %v1110 = vadd.f32 %v1087, %v1109
    %1111 = vdwg.mxu0
    %1112 = vmatpush.msra.mxu0 0.0
    %1113 = vmatpush.msra.mxu0 %v1079
    %1114 = vmatpush.msra.mxu0 %v1071
    %1115 = vmatpush.msra.mxu0 %v1063
    %1116 = vmatpush.msra.mxu0 %v1055
    %1117 = vmatpush.msra.mxu0 %v1047
    %1118 = vmatpush.msra.mxu0 %v1039
    %1119 = vmatpush.msra.mxu0 %v1031
    %1120 = vmatpush.msra.mxu0 %v967
    %1121 = vmatpush.msra.mxu0 %v1023
    %1122 = vmatpush.msra.mxu0 %v1015
    %1123 = vmatpush.msra.mxu0 %v1007
    %1124 = vmatpush.msra.mxu0 %v999
    %1125 = vmatpush.msra.mxu0 %v991
    %1126 = vmatpush.msra.mxu0 %v983
    %1127 = vmatpush.msra.mxu0 %v975
    %1128 = vmatmul.f32.gmra.mxu0 %v1090
    %v1129 = vpop.f32.mrf.mxu0
    %v1130 = vadd.f32 %v1087, %v1129
    %1131 = vdwg.mxu0
    %v1132 = vmul.f32 %v1110, 0.2
    %v1133 = vmul.f32 %v1130, 0.2
    %v1134 = vmax.f32 %v1110, %v1132
    %v1135 = vmax.f32 %v1130, %v1133
    %1136 = vrot.lane.b32.xlu0 %v1134, 7
    %v1137 = vpop.permute.xlu0 %1136
    %1138 = vrot.lane.b32.xlu0 %v1135, 7
    %v1139 = vpop.permute.xlu0 %1138
    %v1140 = vsel %vm105, %v1137, %v1139
    %v1141 = vsel %vm105, %v1139, %v1137
    %v1142 = vsel %vm73, %v1141, 0.0
    %v1143 = vsel %vm74, %v1140, 0.0
    %1144 = vrot.lane.b32.xlu0 %v1134, 6
    %v1145 = vpop.permute.xlu0 %1144
    %1146 = vrot.lane.b32.xlu0 %v1135, 6
    %v1147 = vpop.permute.xlu0 %1146
    %v1148 = vsel %vm114, %v1145, %v1147
    %v1149 = vsel %vm114, %v1147, %v1145
    %v1150 = vsel %vm75, %v1149, 0.0
    %v1151 = vsel %vm76, %v1148, 0.0
    %1152 = vrot.lane.b32.xlu0 %v1134, 5
    %v1153 = vpop.permute.xlu0 %1152
    %1154 = vrot.lane.b32.xlu0 %v1135, 5
    %v1155 = vpop.permute.xlu0 %1154
    %v1156 = vsel %vm123, %v1153, %v1155
    %v1157 = vsel %vm123, %v1155, %v1153
    %v1158 = vsel %vm77, %v1157, 0.0
    %v1159 = vsel %vm78, %v1156, 0.0
    %1160 = vrot.lane.b32.xlu0 %v1134, 4
    %v1161 = vpop.permute.xlu0 %1160
    %1162 = vrot.lane.b32.xlu0 %v1135, 4
    %v1163 = vpop.permute.xlu0 %1162
    %v1164 = vsel %vm132, %v1161, %v1163
    %v1165 = vsel %vm132, %v1163, %v1161
    %v1166 = vsel %vm79, %v1165, 0.0
    %v1167 = vsel %vm80, %v1164, 0.0
    %1168 = vrot.lane.b32.xlu0 %v1134, 3
    %v1169 = vpop.permute.xlu0 %1168
    %1170 = vrot.lane.b32.xlu0 %v1135, 3
    %v1171 = vpop.permute.xlu0 %1170
    %v1172 = vsel %vm141, %v1169, %v1171
    %v1173 = vsel %vm141, %v1171, %v1169
    %v1174 = vsel %vm81, %v1173, 0.0
    %v1175 = vsel %vm82, %v1172, 0.0
    %1176 = vrot.lane.b32.xlu0 %v1134, 2
    %v1177 = vpop.permute.xlu0 %1176
    %1178 = vrot.lane.b32.xlu0 %v1135, 2
    %v1179 = vpop.permute.xlu0 %1178
    %v1180 = vsel %vm150, %v1177, %v1179
    %v1181 = vsel %vm150, %v1179, %v1177
    %v1182 = vsel %vm83, %v1181, 0.0
    %v1183 = vsel %vm84, %v1180, 0.0
    %1184 = vrot.lane.b32.xlu0 %v1134, 1
    %v1185 = vpop.permute.xlu0 %1184
    %1186 = vrot.lane.b32.xlu0 %v1135, 1
    %v1187 = vpop.permute.xlu0 %1186
    %v1188 = vsel %vm159, %v1185, %v1187
    %v1189 = vsel %vm159, %v1187, %v1185
    %v1190 = vsel %vm85, %v1189, 0.0
    %v1191 = vsel %vm86, %v1188, 0.0
    %1192 = vrot.lane.b32.xlu0 %v1134, 127
    %v1193 = vpop.permute.xlu0 %1192
    %1194 = vrot.lane.b32.xlu0 %v1135, 127
    %v1195 = vpop.permute.xlu0 %1194
    %v1196 = vsel %vm168, %v1193, %v1195
    %v1197 = vsel %vm168, %v1195, %v1193
    %v1198 = vsel %vm87, %v1196, 0.0
    %v1199 = vsel %vm88, %v1197, 0.0
    %1200 = vrot.lane.b32.xlu0 %v1134, 126
    %v1201 = vpop.permute.xlu0 %1200
    %1202 = vrot.lane.b32.xlu0 %v1135, 126
    %v1203 = vpop.permute.xlu0 %1202
    %v1204 = vsel %vm177, %v1201, %v1203
    %v1205 = vsel %vm177, %v1203, %v1201
    %v1206 = vsel %vm89, %v1204, 0.0
    %v1207 = vsel %vm90, %v1205, 0.0
    %1208 = vrot.lane.b32.xlu0 %v1134, 125
    %v1209 = vpop.permute.xlu0 %1208
    %1210 = vrot.lane.b32.xlu0 %v1135, 125
    %v1211 = vpop.permute.xlu0 %1210
    %v1212 = vsel %vm186, %v1209, %v1211
    %v1213 = vsel %vm186, %v1211, %v1209
    %v1214 = vsel %vm91, %v1212, 0.0
    %v1215 = vsel %vm92, %v1213, 0.0
    %1216 = vrot.lane.b32.xlu0 %v1134, 124
    %v1217 = vpop.permute.xlu0 %1216
    %1218 = vrot.lane.b32.xlu0 %v1135, 124
    %v1219 = vpop.permute.xlu0 %1218
    %v1220 = vsel %vm195, %v1217, %v1219
    %v1221 = vsel %vm195, %v1219, %v1217
    %v1222 = vsel %vm93, %v1220, 0.0
    %v1223 = vsel %vm94, %v1221, 0.0
    %1224 = vrot.lane.b32.xlu0 %v1134, 123
    %v1225 = vpop.permute.xlu0 %1224
    %1226 = vrot.lane.b32.xlu0 %v1135, 123
    %v1227 = vpop.permute.xlu0 %1226
    %v1228 = vsel %vm204, %v1225, %v1227
    %v1229 = vsel %vm204, %v1227, %v1225
    %v1230 = vsel %vm95, %v1228, 0.0
    %v1231 = vsel %vm96, %v1229, 0.0
    %1232 = vrot.lane.b32.xlu0 %v1134, 122
    %v1233 = vpop.permute.xlu0 %1232
    %1234 = vrot.lane.b32.xlu0 %v1135, 122
    %v1235 = vpop.permute.xlu0 %1234
    %v1236 = vsel %vm213, %v1233, %v1235
    %v1237 = vsel %vm213, %v1235, %v1233
    %v1238 = vsel %vm97, %v1236, 0.0
    %v1239 = vsel %vm98, %v1237, 0.0
    %1240 = vrot.lane.b32.xlu0 %v1134, 121
    %v1241 = vpop.permute.xlu0 %1240
    %1242 = vrot.lane.b32.xlu0 %v1135, 121
    %v1243 = vpop.permute.xlu0 %1242
    %v1244 = vsel %vm222, %v1241, %v1243
    %v1245 = vsel %vm222, %v1243, %v1241
    %v1246 = vsel %vm99, %v1244, 0.0
    %v1247 = vsel %vm100, %v1245, 0.0
    %s1248 = scalar_lea.vmem %s2, 40
    %v1249 = vld [vmem:[%s1248] sm:$0xff]
    %s1250 = scalar_lea.vmem %s4, 40
    %v1251 = vld [vmem:[%s1250] sm:$0xff]
    %1253 = vset.pattern.permute.xlu0 0
    %1254 = vperm.xlu0 %1253, %v1251
    %v1255 = vpop.permute.xlu0 %1254
    %v1258 = vsel %vm241, %v1249, 0
    %1260 = vmatpush.msra.mxu0 0.0
    %1261 = vmatpush.msra.mxu0 %v1246
    %1262 = vmatpush.msra.mxu0 %v1238
    %1263 = vmatpush.msra.mxu0 %v1230
    %1264 = vmatpush.msra.mxu0 %v1222
    %1265 = vmatpush.msra.mxu0 %v1214
    %1266 = vmatpush.msra.mxu0 %v1206
    %1267 = vmatpush.msra.mxu0 %v1198
    %1268 = vmatpush.msra.mxu0 %v1134
    %1269 = vmatpush.msra.mxu0 %v1190
    %1270 = vmatpush.msra.mxu0 %v1182
    %1271 = vmatpush.msra.mxu0 %v1174
    %1272 = vmatpush.msra.mxu0 %v1166
    %1273 = vmatpush.msra.mxu0 %v1158
    %1274 = vmatpush.msra.mxu0 %v1150
    %1275 = vmatpush.msra.mxu0 %v1142
    %1276 = vmatmul.f32.gmra.mxu0 %v1258
    %v1277 = vpop.f32.mrf.mxu0
    %v1278 = vadd.f32 %v1255, %v1277
    %1279 = vdwg.mxu0
    %1280 = vmatpush.msra.mxu0 0.0
    %1281 = vmatpush.msra.mxu0 %v1247
    %1282 = vmatpush.msra.mxu0 %v1239
    %1283 = vmatpush.msra.mxu0 %v1231
    %1284 = vmatpush.msra.mxu0 %v1223
    %1285 = vmatpush.msra.mxu0 %v1215
    %1286 = vmatpush.msra.mxu0 %v1207
    %1287 = vmatpush.msra.mxu0 %v1199
    %1288 = vmatpush.msra.mxu0 %v1135
    %1289 = vmatpush.msra.mxu0 %v1191
    %1290 = vmatpush.msra.mxu0 %v1183
    %1291 = vmatpush.msra.mxu0 %v1175
    %1292 = vmatpush.msra.mxu0 %v1167
    %1293 = vmatpush.msra.mxu0 %v1159
    %1294 = vmatpush.msra.mxu0 %v1151
    %1295 = vmatpush.msra.mxu0 %v1143
    %1296 = vmatmul.f32.gmra.mxu0 %v1258
    %v1297 = vpop.f32.mrf.mxu0
    %v1298 = vadd.f32 %v1255, %v1297
    %1299 = vdwg.mxu0
    %v1300 = vsub.f32 %v774, %v1278
    %v1301 = vsub.f32 %v794, %v1298
    %v1302 = vsub.f32 0.0, %v1300
    %v1303 = vsub.f32 0.0, %v1301
    %v1304 = vmul.f32 %v1302, 1.442695
    %v1305 = vpow.pop %v1304
    %v1306 = vmul.f32 %v1303, 1.442695
    %v1307 = vpow.pop %v1306
    %v1308 = vadd.f32 %v1305, 1.0
    %v1309 = vadd.f32 %v1307, 1.0
    %v1310 = vrcp.pop %v1308
    %v1311 = vmul.f32 %v1308, %v1310
    %v1312 = vsub.f32 1.0, %v1311
    %v1313 = vmul.f32 %v1310, %v1312
    %v1314 = vadd.f32 %v1310, %v1313
    %vm1315 = vweird.f32 %v1308
    %vm1316 = vweird.f32 %v1310
    %vm1317 = vmor %vm1315, %vm1316
    %v1318 = vsel %vm1317, %v1310, %v1314
    %v1319 = vand.u32 2147483647, %v1308
    %vm1320 = vcmp.eq.f32.partialorder %v1319, 8.507059e+37
    %v1321 = vand.u32 %v1308, 2147483648
    %v1322 = vor.u32 1.1754944e-38, %v1321
    %v1323 = vsel %vm1320, %v1322, %v1318
    %v1324 = vmul.f32 1.0, %v1323
    %v1325 = vrcp.pop %v1309
    %v1326 = vmul.f32 %v1309, %v1325
    %v1327 = vsub.f32 1.0, %v1326
    %v1328 = vmul.f32 %v1325, %v1327
    %v1329 = vadd.f32 %v1325, %v1328
    %vm1330 = vweird.f32 %v1309
    %vm1331 = vweird.f32 %v1325
    %vm1332 = vmor %vm1330, %vm1331
    %v1333 = vsel %vm1332, %v1325, %v1329
    %v1334 = vand.u32 2147483647, %v1309
    %vm1335 = vcmp.eq.f32.partialorder %v1334, 8.507059e+37
    %v1336 = vand.u32 %v1309, 2147483648
    %v1337 = vor.u32 1.1754944e-38, %v1336
    %v1338 = vsel %vm1335, %v1337, %v1333
    %v1339 = vmul.f32 1.0, %v1338
    %v1340 = vsub.f32 1.0, %v1324
    %v1341 = vsub.f32 1.0, %v1339
    %v1342 = vmul.f32 %v43, %v1324
    %1343 = vst [vmem:[#allocation5] sm:$0xff] %v1342
    %v1344 = vmul.f32 %v43, %v1340
    %1345 = vst [vmem:[#allocation6] sm:$0xff] %v1344
    %1346 = vst [vmem:[#allocation8] sm:$0xff] %v1324
    %1347 = vst [vmem:[#allocation9] sm:$0xff] %v1340
    %v1348 = vmul.f32 %v45, %v1339
    %s1349 = scalar_lea.vmem [#allocation5], 8
    %1350 = vst [vmem:[%s1349] sm:$0xff] %v1348
    %v1351 = vmul.f32 %v45, %v1341
    %s1352 = scalar_lea.vmem [#allocation6], 8
    %1353 = vst [vmem:[%s1352] sm:$0xff] %v1351
    %s1354 = scalar_lea.vmem [#allocation8], 8
    %1355 = vst [vmem:[%s1354] sm:$0xff] %v1339
    %s1356 = scalar_lea.vmem [#allocation9], 8
    %1357 = vst [vmem:[%s1356] sm:$0xff] %v1341
    // Predicated region
    $region26: #{attention_block_sparse.1} parent=1 // pred_check
      _
    $region27: #{attention_block_sparse.1} parent=1 // pred_check_branch
      %1359 = sbr.rel (0) target = $region29
    $region28: #{attention_block_sparse.1} parent=1 // pred_region
      %1361 = vsyncadd [#allocation4], 0
      %s1362 = sshll.u32 [#allocation5], 4
      %s1363 = int_to_ptr.vmem [resolvable:$true] %s1362
      %s1364 = sshll.u32 %s5, 4
      %s1365 = int_to_ptr.hbm [resolvable:$true] %s1364
      %1370 = dma.vmem_to_hbm [thread:$0]  %s1363, 256, %s1365, [#allocation4], 128, 128, 8
    $region29: #{attention_block_sparse.1} parent=1 // pred_fallthru
      _
    // Predicated region
    $region30: #{attention_block_sparse.1} parent=1 // pred_check
      _
    $region31: #{attention_block_sparse.1} parent=1 // pred_check_branch
      %1372 = sbr.rel (0) target = $region33
    $region32: #{attention_block_sparse.1} parent=1 // pred_region
      %1374 = vsyncadd [#allocation7], 0
      %s1375 = sshll.u32 [#allocation6], 4
      %s1376 = int_to_ptr.vmem [resolvable:$true] %s1375
      %s1377 = sshll.u32 %s6, 4
      %s1378 = int_to_ptr.hbm [resolvable:$true] %s1377
      %1383 = dma.vmem_to_hbm [thread:$0]  %s1376, 256, %s1378, [#allocation7], 128, 128, 8
    $region33: #{attention_block_sparse.1} parent=1 // pred_fallthru
      _
    // Predicated region
    $region34: #{attention_block_sparse.1} parent=1 // pred_check
      _
    $region35: #{attention_block_sparse.1} parent=1 // pred_check_branch
      %1385 = sbr.rel (0) target = $region37
    $region36: #{attention_block_sparse.1} parent=1 // pred_region
      %1387 = vsyncadd [#allocation7], 0
      %s1388 = sshll.u32 [#allocation8], 4
      %s1389 = int_to_ptr.vmem [resolvable:$true] %s1388
      %s1390 = sshll.u32 %s7, 4
      %s1391 = int_to_ptr.hbm [resolvable:$true] %s1390
      %1396 = dma.vmem_to_hbm [thread:$0]  %s1389, 256, %s1391, [#allocation7], 128, 128, 8
    $region37: #{attention_block_sparse.1} parent=1 // pred_fallthru
      _
    // Predicated region
    $region38: #{attention_block_sparse.1} parent=1 // pred_check
      _
    $region39: #{attention_block_sparse.1} parent=1 // pred_check_branch
      %1398 = sbr.rel (0) target = $region41
    $region40: #{attention_block_sparse.1} parent=1 // pred_region
      %1400 = vsyncadd [#allocation10], 0
      %s1401 = sshll.u32 [#allocation9], 4
      %s1402 = int_to_ptr.vmem [resolvable:$true] %s1401
      %s1403 = sshll.u32 %s8, 4
      %s1404 = int_to_ptr.hbm [resolvable:$true] %s1403
      %1409 = dma.vmem_to_hbm [thread:$0]  %s1402, 256, %s1404, [#allocation10], 128, 128, 8
    $region41: #{attention_block_sparse.1} parent=1 // pred_fallthru
      _
    // Predicated region
    $region42: #{attention_block_sparse.1} parent=1 // pred_check
      _
    $region43: #{attention_block_sparse.1} parent=1 // pred_check_branch
      %1411 = sbr.rel (0) target = $region45
    $region44: #{attention_block_sparse.1} parent=1 // pred_region
      %1413 = dma.done [#allocation4], 256
    $region45: #{attention_block_sparse.1} parent=1 // pred_fallthru
      _
    // Predicated region
    $region46: #{attention_block_sparse.1} parent=1 // pred_check
      _
    $region47: #{attention_block_sparse.1} parent=1 // pred_check_branch
      %1415 = sbr.rel (0) target = $region49
    $region48: #{attention_block_sparse.1} parent=1 // pred_region
      %1417 = dma.done [#allocation7], 256
    $region49: #{attention_block_sparse.1} parent=1 // pred_fallthru
      _
    // Predicated region
    $region50: #{attention_block_sparse.1} parent=1 // pred_check
      _
    $region51: #{attention_block_sparse.1} parent=1 // pred_check_branch
      %1419 = sbr.rel (0) target = $region53
    $region52: #{attention_block_sparse.1} parent=1 // pred_region
      %1421 = dma.done [#allocation7], 256
    $region53: #{attention_block_sparse.1} parent=1 // pred_fallthru
      _
    // Predicated region
    $region54: #{attention_block_sparse.1} parent=1 // pred_check
      _
    $region55: #{attention_block_sparse.1} parent=1 // pred_check_branch
      %1423 = sbr.rel (0) target = $region57
    $region56: #{attention_block_sparse.1} parent=1 // pred_region
      %1425 = dma.done [#allocation10], 256
    $region57: #{attention_block_sparse.1} parent=1 // pred_fallthru
      _
    %1426 = vsyncpa [#allocation3], 1
    %1427 = vsyncpa [#allocation4], 1
    %1428 = vsyncpa [#allocation7], 1
    %1429 = vsyncpa [#allocation10], 1

</llo_original>
